<compile_context>
chip_gen: v7x
topology: tpu7x:2x2x1
jax: 0.10.0
libtpu: 0.0.40
codegen_flags: <defaults>
</compile_context>

<pallas_src>
import math
import functools

import jax
import jax.numpy as jnp
from jax import lax
from jax.experimental import pallas as pl
from jax.experimental.pallas import tpu as pltpu


def _pick_tile(HW, padHW, C, max_tile=None):
    """Largest lane-dense (multiple-of-128) tile dividing HW whose big
    in-kernel temporaries fit a conservative VMEM budget."""
    budget = 12 * 1024 * 1024          # bytes for iota + one-hot + tap results
    for T in (2048, 1024, 512, 256, 128):
        if max_tile is not None and T > max_tile:
            continue
        if HW % T:
            continue
        est = padHW * T * (4 + 2) + 4 * C * T * 4 * 4
        if est <= budget:
            return T
    return HW   # tiny images: single full-width tile (equals full array dim)


# -----------------------------------------------------------------------------
# Pallas kernel: swirl_image == get_coordinates + swirl_mapping + grid_sample
# -----------------------------------------------------------------------------
def _swirl_kernel(img_ref, prm_ref, out_ref, *, H, W, radius, min_strength):
    """One (batch, output-tile) grid step.

    img_ref : (1, 4*C, padHW) bf16  zero-padded image, 4 pre-shifted tap copies
    prm_ref : (1, 3, N, 1)   f32    packed [center_x, center_y, |strength|]
    out_ref : (1, C, T)      f32    swirled image tile (flattened spatial)
    """
    C = out_ref.shape[1]
    T = out_ref.shape[2]
    padHW = img_ref.shape[2]
    Wp = W + 2

    t = pl.program_id(1)

    # ---- output pixel coordinates for this tile (get_coordinates) ----------
    # Float floor-div is exact for these pixel-count ranges and proven to
    # lower cleanly (int vector div is not guaranteed to).
    p_i = lax.broadcasted_iota(jnp.int32, (1, T), 1) + t * T
    p_f = p_i.astype(jnp.float32)
    ii = jnp.floor(p_f / W)                   # row index -> y
    jj = p_f - ii * W                         # col index -> x
    xx = (jj / W - 0.5) * 2.0                 # normalized coords in [-1, 1)
    yy = (ii / H - 0.5) * 2.0

    # ---- swirl_mapping ------------------------------------------------------
    cx = prm_ref[0, 0]                        # (N, 1)
    cy = prm_ref[0, 1]
    s = prm_ref[0, 2]                         # |strength|

    dx = xx - cx                              # (N, T)
    dy = yy - cy
    r = jnp.sqrt(dx * dx + dy * dy)
    inv_rad = 5.0 / (radius * math.log(2.0))  # 1 / (radius/5 * log 2)
    a = (s + min_strength) * jnp.exp(-r * inv_rad)
    ca = jnp.cos(a)
    sa = jnp.sin(a)
    # cx + r*cos(a + atan2(dy, dx)) == cx + cos(a)*dx - sin(a)*dy   (no atan2)
    d_xnew = (cx + ca * dx - sa * dy) - xx
    d_ynew = (cy + sa * dx + ca * dy) - yy
    gx = jnp.max(d_xnew, axis=0, keepdims=True) + xx      # (1, T) grid x
    gy = jnp.max(d_ynew, axis=0, keepdims=True) + yy      # (1, T) grid y

    # ---- grid_sample(bilinear, padding_mode='zeros', align_corners=False) --
    px = ((gx + 1.0) * W - 1.0) * 0.5
    py = ((gy + 1.0) * H - 1.0) * 0.5
    x0f = jnp.floor(px)
    y0f = jnp.floor(py)
    wx1 = px - x0f
    wx0 = 1.0 - wx1
    wy1 = py - y0f
    wy0 = 1.0 - wy1
    w00 = wy0 * wx0                           # (1, T) combined tap weights
    w01 = wy0 * wx1
    w10 = wy1 * wx0
    w11 = wy1 * wx1

    x0 = x0f.astype(jnp.int32)                # (1, T) int32 corner indices
    y0 = y0f.astype(jnp.int32)
    # If the base corner lies in [-1, W-1] x [-1, H-1] all four taps land
    # inside the 1-px zero-padded image (pad pixels = 0 reproduce 'zeros'
    # padding exactly); otherwise all four taps are outside -> sample is 0.
    valid = (x0 >= -1) & (x0 <= W - 1) & (y0 >= -1) & (y0 <= H - 1)
    q0 = (y0 + 1) * Wp + (x0 + 1)             # base corner, padded flat index
    q0 = jnp.where(valid, q0, -1)             # -1 never matches the iota

    # Single one-hot gather matrix (int32 compare + one select, cast to bf16).
    q_iota = lax.broadcasted_iota(jnp.int32, (padHW, T), 0)
    gather = jnp.where(q_iota == q0, 1.0, 0.0).astype(jnp.bfloat16)  # (padHW,T)

    # One MXU matmul fetches all four taps for all channels at once.
    img4 = img_ref[0]                                                # (4C, padHW)
    res = jnp.dot(img4, gather, preferred_element_type=jnp.float32)  # (4C, T)

    out = (w00 * res[0:C] + w01 * res[C:2 * C] +
           w10 * res[2 * C:3 * C] + w11 * res[3 * C:4 * C])
    out_ref[0] = out.astype(out_ref.dtype)


def swirl_pallas(images, centers, strengths, *, radius, min_strength,
                 max_tile=None):
    """swirl_image(images, centers, strengths, radius, min_strength) via Pallas."""
    B, C, H, W = images.shape
    N = strengths.shape[1]
    HW = H * W
    Hp, Wp = H + 2, W + 2
    padHW = Hp * Wp
    T = _pick_tile(HW, padHW, C, max_tile=max_tile)
    num_t = HW // T

    # Glue (plain JAX): zero-pad 1 px per side, flatten, and build the four
    # bilinear-tap shifted copies (offsets 0, +1, +Wp, +Wp+1) in bf16.
    img_pad = jnp.pad(images, ((0, 0), (0, 0), (1, 1), (1, 1)))
    flat = img_pad.reshape(B, C, padHW)
    ext = jnp.pad(flat, ((0, 0), (0, 0), (0, Wp + 1)))
    taps = jnp.stack([ext[:, :, d:d + padHW] for d in (0, 1, Wp, Wp + 1)], axis=1)
    img4 = taps.reshape(B, 4 * C, padHW).astype(jnp.bfloat16)

    # Pack per-whirlpool params into one block: (B, 3, N, 1) = [cx, cy, s].
    params = jnp.stack([centers[..., 0], centers[..., 1], strengths],
                       axis=1).astype(jnp.float32)[..., None]

    kernel = functools.partial(_swirl_kernel, H=H, W=W,
                               radius=float(radius),
                               min_strength=float(min_strength))
    out_flat = pl.pallas_call(
        kernel,
        out_shape=jax.ShapeDtypeStruct((B, C, HW), images.dtype),
        grid_spec=pltpu.PrefetchScalarGridSpec(
            num_scalar_prefetch=0,
            grid=(B, num_t),
            in_specs=[
                # Image / params block index is constant across the tile axis,
                # so each is DMA'd once per batch element.
                pl.BlockSpec((1, 4 * C, padHW), lambda b, t: (b, 0, 0)),
                pl.BlockSpec((1, 3, N, 1), lambda b, t: (b, 0, 0, 0)),
            ],
            out_specs=pl.BlockSpec((1, C, T), lambda b, t: (b, 0, t)),
        ),
        compiler_params=pltpu.CompilerParams(
            dimension_semantics=("parallel", "parallel"),
            # 32 MiB: >= everything we allocate (tiles sized to a 12 MiB
            # temporary budget) and safe on v5e/v6e/v7x physical VMEM.
            vmem_limit_bytes=32 * 1024 * 1024),
    )(img4, params)
    return out_flat.reshape(B, C, H, W)


# -----------------------------------------------------------------------------
# Pure-JAX reference (same math) — backward pass of the custom_vjp + checks.
# -----------------------------------------------------------------------------
def _swirl_reference(images, centers, strengths, *, radius, min_strength):
    B, C, H, W = images.shape
    xg, yg = jnp.meshgrid(jnp.arange(W, dtype=jnp.float32),
                          jnp.arange(H, dtype=jnp.float32), indexing="xy")
    xn = (xg / W - 0.5) * 2.0
    yn = (yg / H - 0.5) * 2.0
    cx = centers[..., 0][:, None, None, :]     # (B,1,1,N)
    cy = centers[..., 1][:, None, None, :]
    s = strengths[:, None, None, :]
    dx = xn[None, :, :, None] - cx
    dy = yn[None, :, :, None] - cy
    r = jnp.sqrt(dx * dx + dy * dy)
    rad = radius / 5.0 * math.log(2.0)
    a = (s + min_strength) * jnp.exp(-r / rad)
    ca, sa = jnp.cos(a), jnp.sin(a)
    d_xnew = cx + ca * dx - sa * dy - xn[None, :, :, None]
    d_ynew = cy + sa * dx + ca * dy - yn[None, :, :, None]
    gx = jnp.max(d_xnew, axis=-1) + xn[None]
    gy = jnp.max(d_ynew, axis=-1) + yn[None]
    px = ((gx + 1.0) * W - 1.0) * 0.5
    py = ((gy + 1.0) * H - 1.0) * 0.5
    x0 = jnp.floor(px); x1 = x0 + 1.0
    y0 = jnp.floor(py); y1 = y0 + 1.0
    wx1 = px - x0; wx0 = 1.0 - wx1
    wy1 = py - y0; wy0 = 1.0 - wy1
    imf = images.reshape(B, C, H * W)

    def tap(yc, xc, w):
        valid = ((xc >= 0) & (xc <= W - 1) & (yc >= 0) & (yc <= H - 1)).astype(images.dtype)
        xi = jnp.clip(xc, 0, W - 1).astype(jnp.int32)
        yi = jnp.clip(yc, 0, H - 1).astype(jnp.int32)
        flat = yi * W + xi                                  # (B, H, W)
        vals = jax.vmap(lambda im, f: im[:, f])(imf, flat)  # (B, C, H, W)
        return vals * (w * valid)[:, None, :, :]

    return (tap(y0, x0, wy0 * wx0) + tap(y0, x1, wy0 * wx1) +
            tap(y1, x0, wy1 * wx0) + tap(y1, x1, wy1 * wx1))


# -----------------------------------------------------------------------------
# Glue: synthetic model + l2_loss
# -----------------------------------------------------------------------------
def make_model(key, C, H, W, num_classes=8):
    # Deterministic synthetic stand-in for the external `model` argument.
    wkey, _ = jax.random.split(key)
    Wm = jax.random.normal(wkey, (C * H * W, num_classes), jnp.float32) * 0.02
    bm = jnp.zeros((num_classes,), jnp.float32)

    def model(x):
        return x.reshape(x.shape[0], -1) @ Wm + bm

    return model


def l2_loss(x, y):
    # TODO(synk): l2_loss is not defined in the reference snippet; using mean squared-L2.
    return jnp.mean(jnp.sum((x - y) ** 2, axis=-1))


# -----------------------------------------------------------------------------
# WhirlpoolAdversary forward (linf metric, 'l2' / 'attack' tasks)
# -----------------------------------------------------------------------------
class WhirlpoolAdversary:
    def __init__(self, epsilon, num_steps, step_size, distance_metric,
                 num_whirlpools, whirlpool_radius, whirlpool_min_strength, task):
        if distance_metric != "linf":
            # TODO(synk): 'l2' metric needs normalize_l2 / tensor_clamp_l2, not in reference snippet.
            raise ValueError("only 'linf' distance metric implemented")
        self.epsilon = epsilon
        self.num_steps = num_steps
        self.step_size = step_size
        self.num_whirlpools = num_whirlpools
        self.whirlpool_radius = whirlpool_radius
        self.whirlpool_min_strength = whirlpool_min_strength
        self.task = task
        self.normalise_tensor = jnp.sign
        self.project_tensor = lambda x, eps: jnp.clip(x, 0.0, eps)

        radius = float(whirlpool_radius)
        min_s = float(whirlpool_min_strength)

        @jax.custom_vjp
        def _swirl(images, centers, strengths):
            return swirl_pallas(images, centers, strengths,
                                radius=radius, min_strength=min_s)

        def _fwd(images, centers, strengths):
            out = swirl_pallas(images, centers, strengths,
                               radius=radius, min_strength=min_s)
            return out, (images, centers, strengths)

        def _bwd(res, g):
            # TODO(synk): Pallas forward has no native autodiff; backward uses the exact
            # pure-JAX reference of the same math (mirrors torch.autograd.grad).
            _, vjp = jax.vjp(
                lambda im, c, s: _swirl_reference(im, c, s, radius=radius, min_strength=min_s),
                *res)
            return vjp(g)

        _swirl.defvjp(_fwd, _bwd)
        self._swirl = _swirl

    def forward(self, model, inputs, targets, key):
        B = inputs.shape[0]
        clean_out = model(inputs)
        k1, k2 = jax.random.split(key)
        # linf init: epsilon * U[0,1)
        strengths = self.epsilon * jax.random.uniform(
            k1, (B, self.num_whirlpools), jnp.float32)
        centers = (jax.random.uniform(
            k2, (B, self.num_whirlpools, 2), jnp.float32) - 0.5) * 2.0

        def loss_fn(svars):
            adv = self._swirl(inputs, centers, jnp.abs(svars))
            logits = model(adv)
            if self.task == "l2":
                return l2_loss(logits, clean_out)
            # TODO(synk): 'var_reg' / 'attack' in-loop loss branches need a second
            # strength variable set (reference code is undefined for 'attack').
            raise NotImplementedError

        for _ in range(self.num_steps):
            grad = jax.grad(loss_fn)(strengths)
            strengths = strengths + self.step_size * self.normalise_tensor(grad)
            strengths = self.project_tensor(strengths, self.epsilon)
            strengths = lax.stop_gradient(strengths)

        adv_inputs = self._swirl(inputs, centers, jnp.abs(strengths))
        if self.task != "attack":
            # task == 'l2'
            return l2_loss(model(lax.stop_gradient(adv_inputs)), clean_out)
        return lax.stop_gradient(adv_inputs)


# -----------------------------------------------------------------------------
if __name__ == "__main__":
    key = jax.random.PRNGKey(0)
    (k_img, k_model, k_attack, k_tgt, k_cen, k_str,
     k2_img, k2_cen, k2_str) = jax.random.split(key, 9)

    B, C, H, W = 2, 4, 16, 16
    N_WHIRL = 4
    RADIUS = 1.0
    MIN_STRENGTH = 0.15

    inputs = jax.random.uniform(k_img, (B, C, H, W), jnp.float32)
    targets = jax.random.randint(k_tgt, (B,), 0, 8)
    model = make_model(k_model, C, H, W)

    # --- correctness check: Pallas swirl_image vs pure-JAX reference ---------
    centers_t = (jax.random.uniform(k_cen, (B, N_WHIRL, 2), jnp.float32) - 0.5) * 2.0
    strengths_t = 0.3 * jax.random.uniform(k_str, (B, N_WHIRL), jnp.float32)
    p_out = swirl_pallas(inputs, centers_t, strengths_t,
                         radius=RADIUS, min_strength=MIN_STRENGTH)
    r_out = _swirl_reference(inputs, centers_t, strengths_t,
                             radius=RADIUS, min_strength=MIN_STRENGTH)
    jax.block_until_ready(p_out)
    max_err = float(jnp.max(jnp.abs(p_out - r_out)))
    assert max_err < 2e-2, f"Pallas swirl mismatch: {max_err}"

    # --- correctness at a larger shape (default: one big lane-dense tile) ----
    B2, C2, H2, W2, N2 = 1, 3, 32, 32, 2
    inputs2 = jax.random.uniform(k2_img, (B2, C2, H2, W2), jnp.float32)
    centers2 = (jax.random.uniform(k2_cen, (B2, N2, 2), jnp.float32) - 0.5) * 2.0
    strengths2 = 0.3 * jax.random.uniform(k2_str, (B2, N2), jnp.float32)
    p2 = swirl_pallas(inputs2, centers2, strengths2,
                      radius=RADIUS, min_strength=MIN_STRENGTH)
    r2 = _swirl_reference(inputs2, centers2, strengths2,
                          radius=RADIUS, min_strength=MIN_STRENGTH)
    jax.block_until_ready(p2)
    max_err2 = float(jnp.max(jnp.abs(p2 - r2)))
    assert max_err2 < 2e-2, f"Pallas swirl mismatch (single tile): {max_err2}"

    # --- same shape forced onto the multi-tile grid path ---------------------
    p3 = swirl_pallas(inputs2, centers2, strengths2,
                      radius=RADIUS, min_strength=MIN_STRENGTH, max_tile=512)
    jax.block_until_ready(p3)
    max_err3 = float(jnp.max(jnp.abs(p3 - r2)))
    assert max_err3 < 2e-2, f"Pallas swirl mismatch (tiled): {max_err3}"

    # --- full adversary forward (task='l2', linf) ----------------------------
    adversary = WhirlpoolAdversary(
        epsilon=0.3, num_steps=2, step_size=0.1, distance_metric="linf",
        num_whirlpools=N_WHIRL, whirlpool_radius=RADIUS,
        whirlpool_min_strength=MIN_STRENGTH, task="l2")
    out = adversary.forward(model, inputs, targets, k_attack)
    jax.block_until_ready(out)

    # --- also exercise the 'attack' task (num_steps=0 returns the swirled image)
    adversary_img = WhirlpoolAdversary(
        epsilon=0.3, num_steps=0, step_size=0.1, distance_metric="linf",
        num_whirlpools=N_WHIRL, whirlpool_radius=RADIUS,
        whirlpool_min_strength=MIN_STRENGTH, task="attack")
    adv_img = adversary_img.forward(model, inputs, targets, k_attack)
    jax.block_until_ready(adv_img)
    assert adv_img.shape == (B, C, H, W)

    print("KERNEL_OK")
</pallas_src>

<mosaic_0001>
module attributes {stable_mosaic.version = 11 : i64} {
  func.func @_swirl_kernel(%arg0: i32, %arg1: i32, %arg2: memref<1x16x324xbf16, #tpu.memory_space<vmem>>, %arg3: memref<1x3x4x1xf32, #tpu.memory_space<vmem>>, %arg4: memref<1x4x256xf32, #tpu.memory_space<vmem>>) attributes {dimension_semantics = [#tpu.dimension_semantics<parallel>, #tpu.dimension_semantics<parallel>], iteration_bounds = array<i64: 2, 1>, scalar_prefetch = 0 : i64, scratch_operands = 0 : i64, tpu.core_type = #tpu.core_type<tc>, window_params = [{transform_indices = @transform_0, window_bounds = array<i64: 1, 16, 324>}, {transform_indices = @transform_1, window_bounds = array<i64: 1, 3, 4, 1>}, {transform_indices = @transform_2, window_bounds = array<i64: 1, 4, 256>}]} {
    %0 = tpu.iota {dimensions = array<i32: 1>} : vector<1x256xi32>
    %c256_i32 = arith.constant 256 : i32
    %1 = arith.muli %arg1, %c256_i32 : i32
    %2 = vector.broadcast %1 : i32 to vector<1x256xi32>
    %3 = arith.addi %0, %2 : vector<1x256xi32>
    %4 = arith.sitofp %3 : vector<1x256xi32> to vector<1x256xf32>
    %cst = arith.constant 1.600000e+01 : f32
    %5 = vector.broadcast %cst : f32 to vector<1x256xf32>
    %6 = arith.divf %4, %5 : vector<1x256xf32>
    %7 = math.floor %6 : vector<1x256xf32>
    %cst_0 = arith.constant 1.600000e+01 : f32
    %8 = vector.broadcast %cst_0 : f32 to vector<1x256xf32>
    %9 = arith.mulf %7, %8 : vector<1x256xf32>
    %10 = arith.subf %4, %9 : vector<1x256xf32>
    %cst_1 = arith.constant 1.600000e+01 : f32
    %11 = vector.broadcast %cst_1 : f32 to vector<1x256xf32>
    %12 = arith.divf %10, %11 : vector<1x256xf32>
    %cst_2 = arith.constant 5.000000e-01 : f32
    %13 = vector.broadcast %cst_2 : f32 to vector<1x256xf32>
    %14 = arith.subf %12, %13 : vector<1x256xf32>
    %cst_3 = arith.constant 2.000000e+00 : f32
    %15 = vector.broadcast %cst_3 : f32 to vector<1x256xf32>
    %16 = arith.mulf %14, %15 : vector<1x256xf32>
    %cst_4 = arith.constant 1.600000e+01 : f32
    %17 = vector.broadcast %cst_4 : f32 to vector<1x256xf32>
    %18 = arith.divf %7, %17 : vector<1x256xf32>
    %cst_5 = arith.constant 5.000000e-01 : f32
    %19 = vector.broadcast %cst_5 : f32 to vector<1x256xf32>
    %20 = arith.subf %18, %19 : vector<1x256xf32>
    %cst_6 = arith.constant 2.000000e+00 : f32
    %21 = vector.broadcast %cst_6 : f32 to vector<1x256xf32>
    %22 = arith.mulf %20, %21 : vector<1x256xf32>
    %c0 = arith.constant 0 : index
    %c0_7 = arith.constant 0 : index
    %c0_8 = arith.constant 0 : index
    %c0_9 = arith.constant 0 : index
    %23 = vector.load %arg3[%c0, %c0_7, %c0_8, %c0_9] : memref<1x3x4x1xf32, #tpu.memory_space<vmem>>, vector<1x1x4x1xf32>
    %24 = vector.shape_cast %23 : vector<1x1x4x1xf32> to vector<4x1xf32>
    %c0_10 = arith.constant 0 : index
    %c1 = arith.constant 1 : index
    %c0_11 = arith.constant 0 : index
    %c0_12 = arith.constant 0 : index
    %25 = vector.load %arg3[%c0_10, %c1, %c0_11, %c0_12] : memref<1x3x4x1xf32, #tpu.memory_space<vmem>>, vector<1x1x4x1xf32>
    %26 = vector.shape_cast %25 : vector<1x1x4x1xf32> to vector<4x1xf32>
    %c0_13 = arith.constant 0 : index
    %c2 = arith.constant 2 : index
    %c0_14 = arith.constant 0 : index
    %c0_15 = arith.constant 0 : index
    %27 = vector.load %arg3[%c0_13, %c2, %c0_14, %c0_15] : memref<1x3x4x1xf32, #tpu.memory_space<vmem>>, vector<1x1x4x1xf32>
    %28 = vector.shape_cast %27 : vector<1x1x4x1xf32> to vector<4x1xf32>
    %29 = vector.broadcast %16 : vector<1x256xf32> to vector<4x256xf32>
    %30 = vector.broadcast %24 : vector<4x1xf32> to vector<4x256xf32>
    %31 = arith.subf %29, %30 : vector<4x256xf32>
    %32 = vector.broadcast %22 : vector<1x256xf32> to vector<4x256xf32>
    %33 = vector.broadcast %26 : vector<4x1xf32> to vector<4x256xf32>
    %34 = arith.subf %32, %33 : vector<4x256xf32>
    %35 = arith.mulf %31, %31 : vector<4x256xf32>
    %36 = arith.mulf %34, %34 : vector<4x256xf32>
    %37 = arith.addf %35, %36 : vector<4x256xf32>
    %38 = math.sqrt %37 : vector<4x256xf32>
    %cst_16 = arith.constant 1.500000e-01 : f32
    %39 = vector.broadcast %cst_16 : f32 to vector<4x1xf32>
    %40 = arith.addf %28, %39 : vector<4x1xf32>
    %cst_17 = arith.constant 0.000000e+00 : f32
    %41 = vector.broadcast %cst_17 : f32 to vector<4x256xf32>
    %42 = arith.subf %41, %38 : vector<4x256xf32>
    %cst_18 = arith.constant 7.21347522 : f32
    %43 = vector.broadcast %cst_18 : f32 to vector<4x256xf32>
    %44 = arith.mulf %42, %43 : vector<4x256xf32>
    %45 = math.exp %44 : vector<4x256xf32>
    %46 = vector.broadcast %40 : vector<4x1xf32> to vector<4x256xf32>
    %47 = arith.mulf %46, %45 : vector<4x256xf32>
    %48 = math.cos %47 : vector<4x256xf32>
    %49 = math.sin %47 : vector<4x256xf32>
    %50 = arith.mulf %48, %31 : vector<4x256xf32>
    %51 = vector.broadcast %24 : vector<4x1xf32> to vector<4x256xf32>
    %52 = arith.addf %51, %50 : vector<4x256xf32>
    %53 = arith.mulf %49, %34 : vector<4x256xf32>
    %54 = arith.subf %52, %53 : vector<4x256xf32>
    %55 = vector.broadcast %16 : vector<1x256xf32> to vector<4x256xf32>
    %56 = arith.subf %54, %55 : vector<4x256xf32>
    %57 = arith.mulf %49, %31 : vector<4x256xf32>
    %58 = vector.broadcast %26 : vector<4x1xf32> to vector<4x256xf32>
    %59 = arith.addf %58, %57 : vector<4x256xf32>
    %60 = arith.mulf %48, %34 : vector<4x256xf32>
    %61 = arith.addf %59, %60 : vector<4x256xf32>
    %62 = vector.broadcast %22 : vector<1x256xf32> to vector<4x256xf32>
    %63 = arith.subf %61, %62 : vector<4x256xf32>
    %cst_19 = arith.constant dense<0xFF800000> : vector<256xf32>
    %64 = vector.multi_reduction <maximumf>, %56, %cst_19 [0] : vector<4x256xf32> to vector<256xf32>
    %65 = vector.shape_cast %64 : vector<256xf32> to vector<1x256xf32>
    %66 = arith.addf %65, %16 : vector<1x256xf32>
    %cst_20 = arith.constant dense<0xFF800000> : vector<256xf32>
    %67 = vector.multi_reduction <maximumf>, %63, %cst_20 [0] : vector<4x256xf32> to vector<256xf32>
    %68 = vector.shape_cast %67 : vector<256xf32> to vector<1x256xf32>
    %69 = arith.addf %68, %22 : vector<1x256xf32>
    %cst_21 = arith.constant 1.000000e+00 : f32
    %70 = vector.broadcast %cst_21 : f32 to vector<1x256xf32>
    %71 = arith.addf %66, %70 : vector<1x256xf32>
    %cst_22 = arith.constant 1.600000e+01 : f32
    %72 = vector.broadcast %cst_22 : f32 to vector<1x256xf32>
    %73 = arith.mulf %71, %72 : vector<1x256xf32>
    %cst_23 = arith.constant 1.000000e+00 : f32
    %74 = vector.broadcast %cst_23 : f32 to vector<1x256xf32>
    %75 = arith.subf %73, %74 : vector<1x256xf32>
    %cst_24 = arith.constant 5.000000e-01 : f32
    %76 = vector.broadcast %cst_24 : f32 to vector<1x256xf32>
    %77 = arith.mulf %75, %76 : vector<1x256xf32>
    %cst_25 = arith.constant 1.000000e+00 : f32
    %78 = vector.broadcast %cst_25 : f32 to vector<1x256xf32>
    %79 = arith.addf %69, %78 : vector<1x256xf32>
    %cst_26 = arith.constant 1.600000e+01 : f32
    %80 = vector.broadcast %cst_26 : f32 to vector<1x256xf32>
    %81 = arith.mulf %79, %80 : vector<1x256xf32>
    %cst_27 = arith.constant 1.000000e+00 : f32
    %82 = vector.broadcast %cst_27 : f32 to vector<1x256xf32>
    %83 = arith.subf %81, %82 : vector<1x256xf32>
    %cst_28 = arith.constant 5.000000e-01 : f32
    %84 = vector.broadcast %cst_28 : f32 to vector<1x256xf32>
    %85 = arith.mulf %83, %84 : vector<1x256xf32>
    %86 = math.floor %77 : vector<1x256xf32>
    %87 = math.floor %85 : vector<1x256xf32>
    %88 = arith.subf %77, %86 : vector<1x256xf32>
    %cst_29 = arith.constant 1.000000e+00 : f32
    %89 = vector.broadcast %cst_29 : f32 to vector<1x256xf32>
    %90 = arith.subf %89, %88 : vector<1x256xf32>
    %91 = arith.subf %85, %87 : vector<1x256xf32>
    %cst_30 = arith.constant 1.000000e+00 : f32
    %92 = vector.broadcast %cst_30 : f32 to vector<1x256xf32>
    %93 = arith.subf %92, %91 : vector<1x256xf32>
    %94 = arith.mulf %93, %90 : vector<1x256xf32>
    %95 = arith.mulf %93, %88 : vector<1x256xf32>
    %96 = arith.mulf %91, %90 : vector<1x256xf32>
    %97 = arith.mulf %91, %88 : vector<1x256xf32>
    %98 = arith.fptosi %86 : vector<1x256xf32> to vector<1x256xi32>
    %99 = arith.fptosi %87 : vector<1x256xf32> to vector<1x256xi32>
    %c-1_i32 = arith.constant -1 : i32
    %100 = vector.broadcast %c-1_i32 : i32 to vector<1x256xi32>
    %101 = arith.cmpi sge, %98, %100 : vector<1x256xi32>
    %c15_i32 = arith.constant 15 : i32
    %102 = vector.broadcast %c15_i32 : i32 to vector<1x256xi32>
    %103 = arith.cmpi sle, %98, %102 : vector<1x256xi32>
    %104 = arith.andi %101, %103 : vector<1x256xi1>
    %c-1_i32_31 = arith.constant -1 : i32
    %105 = vector.broadcast %c-1_i32_31 : i32 to vector<1x256xi32>
    %106 = arith.cmpi sge, %99, %105 : vector<1x256xi32>
    %107 = arith.andi %104, %106 : vector<1x256xi1>
    %c15_i32_32 = arith.constant 15 : i32
    %108 = vector.broadcast %c15_i32_32 : i32 to vector<1x256xi32>
    %109 = arith.cmpi sle, %99, %108 : vector<1x256xi32>
    %110 = arith.andi %107, %109 : vector<1x256xi1>
    %c1_i32 = arith.constant 1 : i32
    %111 = vector.broadcast %c1_i32 : i32 to vector<1x256xi32>
    %112 = arith.addi %99, %111 : vector<1x256xi32>
    %c18_i32 = arith.constant 18 : i32
    %113 = vector.broadcast %c18_i32 : i32 to vector<1x256xi32>
    %114 = arith.muli %112, %113 : vector<1x256xi32>
    %c1_i32_33 = arith.constant 1 : i32
    %115 = vector.broadcast %c1_i32_33 : i32 to vector<1x256xi32>
    %116 = arith.addi %98, %115 : vector<1x256xi32>
    %117 = arith.addi %114, %116 : vector<1x256xi32>
    %c-1_i32_34 = arith.constant -1 : i32
    %118 = vector.broadcast %c-1_i32_34 : i32 to vector<1x256xi32>
    %119 = arith.select %110, %117, %118 : vector<1x256xi1>, vector<1x256xi32>
    %120 = tpu.iota {dimensions = array<i32: 0>} : vector<324x256xi32>
    %121 = vector.broadcast %119 : vector<1x256xi32> to vector<324x256xi32>
    %122 = arith.cmpi eq, %120, %121 : vector<324x256xi32>
    %cst_35 = arith.constant 1.000000e+00 : f32
    %cst_36 = arith.constant 0.000000e+00 : f32
    %123 = vector.broadcast %cst_35 : f32 to vector<324x256xf32>
    %124 = vector.broadcast %cst_36 : f32 to vector<324x256xf32>
    %125 = arith.select %122, %123, %124 : vector<324x256xi1>, vector<324x256xf32>
    %126 = arith.truncf %125 : vector<324x256xf32> to vector<324x256xbf16>
    %c0_37 = arith.constant 0 : index
    %c0_38 = arith.constant 0 : index
    %c0_39 = arith.constant 0 : index
    %127 = vector.load %arg2[%c0_37, %c0_38, %c0_39] : memref<1x16x324xbf16, #tpu.memory_space<vmem>>, vector<1x16x324xbf16>
    %128 = vector.shape_cast %127 : vector<1x16x324xbf16> to vector<16x324xbf16>
    %cst_40 = arith.constant dense<0.000000e+00> : vector<16x256xf32>
    %129 = tpu.matmul %128, %126, %cst_40 {dimension_numbers = #tpu.dot_dimension_numbers<[1], [0], [0], [1], [0, 0, 1, 1], [], []>} : vector<16x324xbf16>, vector<324x256xbf16>, vector<16x256xf32> -> vector<16x256xf32>
    %130 = vector.extract_strided_slice %129 {offsets = [0, 0], sizes = [4, 256], strides = [1, 1]} : vector<16x256xf32> to vector<4x256xf32>
    %131 = vector.broadcast %94 : vector<1x256xf32> to vector<4x256xf32>
    %132 = arith.mulf %131, %130 : vector<4x256xf32>
    %133 = vector.extract_strided_slice %129 {offsets = [4, 0], sizes = [4, 256], strides = [1, 1]} : vector<16x256xf32> to vector<4x256xf32>
    %134 = vector.broadcast %95 : vector<1x256xf32> to vector<4x256xf32>
    %135 = arith.mulf %134, %133 : vector<4x256xf32>
    %136 = arith.addf %132, %135 : vector<4x256xf32>
    %137 = vector.extract_strided_slice %129 {offsets = [8, 0], sizes = [4, 256], strides = [1, 1]} : vector<16x256xf32> to vector<4x256xf32>
    %138 = vector.broadcast %96 : vector<1x256xf32> to vector<4x256xf32>
    %139 = arith.mulf %138, %137 : vector<4x256xf32>
    %140 = arith.addf %136, %139 : vector<4x256xf32>
    %141 = vector.extract_strided_slice %129 {offsets = [12, 0], sizes = [4, 256], strides = [1, 1]} : vector<16x256xf32> to vector<4x256xf32>
    %142 = vector.broadcast %97 : vector<1x256xf32> to vector<4x256xf32>
    %143 = arith.mulf %142, %141 : vector<4x256xf32>
    %144 = arith.addf %140, %143 : vector<4x256xf32>
    %c0_41 = arith.constant 0 : index
    %c0_42 = arith.constant 0 : index
    %c0_43 = arith.constant 0 : index
    %145 = vector.load %arg4[%c0_41, %c0_42, %c0_43] : memref<1x4x256xf32, #tpu.memory_space<vmem>>, vector<1x4x256xf32>
    %146 = vector.shape_cast %145 : vector<1x4x256xf32> to vector<4x256xf32>
    %147 = vector.shape_cast %144 : vector<4x256xf32> to vector<1x4x256xf32>
    tpu.vector_store %arg4[%c0_41, %c0_42, %c0_43], %147 {strides = array<i32>} : memref<1x4x256xf32, #tpu.memory_space<vmem>>, vector<1x4x256xf32>,
    return
  }
  func.func @transform_0(%arg0: i32, %arg1: i32) -> (i32, i32, i32) {
    %c0_i32 = arith.constant 0 : i32
    %c0_i32_0 = arith.constant 0 : i32
    %c0_i32_1 = arith.constant 0 : i32
    return %arg0, %c0_i32, %c0_i32_0 : i32, i32, i32
  }
  func.func @transform_1(%arg0: i32, %arg1: i32) -> (i32, i32, i32, i32) {
    %c0_i32 = arith.constant 0 : i32
    %c0_i32_0 = arith.constant 0 : i32
    %c0_i32_1 = arith.constant 0 : i32
    %c0_i32_2 = arith.constant 0 : i32
    return %arg0, %c0_i32, %c0_i32_0, %c0_i32_1 : i32, i32, i32, i32
  }
  func.func @transform_2(%arg0: i32, %arg1: i32) -> (i32, i32, i32) {
    %c0_i32 = arith.constant 0 : i32
    %c0_i32_0 = arith.constant 0 : i32
    return %arg0, %c0_i32, %arg1 : i32, i32, i32
  }
}

</mosaic_0001>

<llo_original>
// kernel: tpu_custom_call.1
$region0: #{tpu_custom_call.1}
  #allocation0 [shape = 'u32[]', space=smem, size = 0x4, offset = 0x4, fixed_abs, tag = 'smem constant byte address 0x4 - core index']
  #allocation1 [shape = 'u32[144,128]{1,0:T(1,128)}', space=vmem, size = 0x12000, scoped, tag = 'internal scratch']
  %s0 = inlined_call_operand.hbm [shape: bf16[2,16,324], index: 0, kind: input, shape index: {}]
  %s1 = inlined_call_operand.vmem [shape: f32[2,3,4,1], index: 1, kind: input, shape index: {}]
  %s2 = inlined_call_operand.hbm [shape: f32[2,4,256], index: 2, kind: output, shape index: {}]
  %s3 = sld [smem:[#allocation0]]
  $region45: #{tpu_custom_call.1} parent=0
    _
  %s5 = ssub.s32 1, %s3
  %s6 = scalar_select 0, %s5, %s3
  $region1: #{tpu_custom_call.1} parent=0
    #allocation2 [shape = 'u8[24576]{0}', space=vmem, size = 0x6000, scoped, tag = 'input window, operand 0']
    #allocation3 [shape = 's32[2]{0}', space=sflag, size = 0x8, scoped, tag = 'scoped memory for tpu_custom_call.1']
    #allocation4 [shape = 's32[2]{0}', space=sflag, size = 0x8, scoped, tag = 'scoped memory for tpu_custom_call.1']
    #allocation5 [shape = 'u8[8192]{0}', space=vmem, size = 0x2000, scoped, tag = 'output window, operand 0']
    %7 = vsyncpa [#allocation3], 0
    %s8 = scalar_lea.sflag [#allocation3], 1
    %9 = vsyncpa %s8, 0
    %10 = vsyncpa [#allocation4], 0
    %s11 = scalar_lea.sflag [#allocation4], 1
    %12 = vsyncpa %s11, 0
    loop: start=0, step=1, limit=4
    $region2: #{tpu_custom_call.1} parent=1 // loop_pre_header
      _
    $region3: #{tpu_custom_call.1} parent=1 // loop_header
      %s14 = sphi 0, %s18
      %p15 = scmp.ge.s32.totalorder %s14, 4
      %s21 = sphi 0, %s33
      %s22 = sphi 0, %s29
      %s23 = sphi 0, %s21
      %s24 = sphi 0, %s22
      %s25 = sphi 0, %s23
      %s26 = sphi 0, %s24
      %s36 = sphi 0, %s38
      %s39 = sphi 0, %s36
      %s40 = sphi 0, %s39
      %s56 = sphi 0, %s40
      %s62 = sphi 0, %s64
      %s65 = sphi 0, %s62
      %s66 = sphi 0, %s65
      %s82 = sphi 0, %s66
      %s90 = sphi 0, %s92
      %s93 = sphi 0, %s90
      %s94 = sphi 0, %s93
      %s110 = sphi 0, %s94
    $region4: #{tpu_custom_call.1} parent=1 // loop_header_branch
      %17 = sbr.rel (%p15) target = $region8
    $region5: #{tpu_custom_call.1} parent=1 // loop_body
      %s19 = ssub.s32 %s14, 1
      %s20 = ssub.s32 %s14, 2
      %s27 = sadd.s32 1, %s22
      %p28 = scmp.ge.s32.totalorder %s27, 1
      %s29 = scalar_select %p28, 0, %s27
      %s30 = sadd.s32 1, %s21
      %s31 = scalar_select %p28, %s30, %s21
      %p32 = scmp.ge.s32.totalorder %s31, 2
      %s33 = scalar_select %p32, 0, %s31
      %s34 = ssub.s32 %s21, %s33
      %p35 = scmp.eq.s32.totalorder %s34, 0
      %s37 = sadd.s32 %s36, 1
      %s38 = scalar_select %p35, %s36, %s37
      %p41 = pneg %p35
      %p42 = scmp.eq.s32.totalorder %s14, 1
      %p43 = por %p41, %p42
      %p44 = scmp.ne.s32.totalorder %s36, %s39
      %p45 = scmp.eq.s32.totalorder %s14, 0
      %p46 = por %p44, %p45
      %p47 = scmp.ne.s32.totalorder %s36, %s39
      %p48 = scmp.eq.s32.totalorder %s19, 1
      %p49 = por %p47, %p48
      %p50 = scmp.ne.s32.totalorder %s39, %s40
      %p51 = scmp.eq.s32.totalorder %s19, 0
      %p52 = por %p50, %p51
      %p53 = scmp.ne.s32.totalorder %s39, %s40
      %p54 = scmp.eq.s32.totalorder %s20, 1
      %p55 = por %p53, %p54
      %p57 = scmp.ne.s32.totalorder %s40, %s56
      %p58 = scmp.eq.s32.totalorder %s20, 0
      %p59 = por %p57, %p58
      %s60 = ssub.s32 %s21, %s33
      %p61 = scmp.eq.s32.totalorder %s60, 0
      %s63 = sadd.s32 %s62, 1
      %s64 = scalar_select %p61, %s62, %s63
      %p67 = pneg %p61
      %p68 = scmp.eq.s32.totalorder %s14, 1
      %p69 = por %p67, %p68
      %p70 = scmp.ne.s32.totalorder %s62, %s65
      %p71 = scmp.eq.s32.totalorder %s14, 0
      %p72 = por %p70, %p71
      %p73 = scmp.ne.s32.totalorder %s62, %s65
      %p74 = scmp.eq.s32.totalorder %s19, 1
      %p75 = por %p73, %p74
      %p76 = scmp.ne.s32.totalorder %s65, %s66
      %p77 = scmp.eq.s32.totalorder %s19, 0
      %p78 = por %p76, %p77
      %p79 = scmp.ne.s32.totalorder %s65, %s66
      %p80 = scmp.eq.s32.totalorder %s20, 1
      %p81 = por %p79, %p80
      %p83 = scmp.ne.s32.totalorder %s66, %s82
      %p84 = scmp.eq.s32.totalorder %s20, 0
      %p85 = por %p83, %p84
      %s86 = ssub.s32 %s21, %s33
      %s87 = ssub.s32 %s22, %s29
      %s88 = sor.u32 %s86, %s87
      %p89 = scmp.eq.s32.totalorder %s88, 0
      %s91 = sadd.s32 %s90, 1
      %s92 = scalar_select %p89, %s90, %s91
      %p95 = pneg %p89
      %p96 = scmp.eq.s32.totalorder %s14, 1
      %p97 = por %p95, %p96
      %p98 = scmp.ne.s32.totalorder %s90, %s93
      %p99 = scmp.eq.s32.totalorder %s14, 0
      %p100 = por %p98, %p99
      %p101 = scmp.ne.s32.totalorder %s90, %s93
      %p102 = scmp.eq.s32.totalorder %s19, 1
      %p103 = por %p101, %p102
      %p104 = scmp.ne.s32.totalorder %s93, %s94
      %p105 = scmp.eq.s32.totalorder %s19, 0
      %p106 = por %p104, %p105
      %p107 = scmp.ne.s32.totalorder %s93, %s94
      %p108 = scmp.eq.s32.totalorder %s20, 1
      %p109 = por %p107, %p108
      %p111 = scmp.ne.s32.totalorder %s94, %s110
      %p112 = scmp.eq.s32.totalorder %s20, 0
      %p113 = por %p111, %p112
      %p114 = scmp.le.s32.totalorder 1, %s14
      %p115 = scmp.lt.s32.totalorder %s14, 3
      %p116 = pnand %p114, %p115
      %p117 = pneg %p116
      // Predicated region
      $region9: #{tpu_custom_call.1} parent=5 // pred_check
        _
      $region10: #{tpu_custom_call.1} parent=5 // pred_check_branch
        %119 = sbr.rel (%p116) target = $region12
      $region11: #{tpu_custom_call.1} parent=5 // pred_region
        %s120 = ssub.s32 %s14, 1
      $region12: #{tpu_custom_call.1} parent=5 // pred_fallthru
        _
      %p121 = scmp.lt.s32.totalorder %s14, 2
      // Predicated region
      $region13: #{tpu_custom_call.1} parent=5 // pred_check
        %p122 = pneg %p121
      $region14: #{tpu_custom_call.1} parent=5 // pred_check_branch
        %124 = sbr.rel (%p122) target = $region16
      $region15: #{tpu_custom_call.1} parent=5 // pred_region
        // Predicated region
        $region17: #{tpu_custom_call.1} parent=15 // pred_check
          %p125 = pneg %p46
        $region18: #{tpu_custom_call.1} parent=15 // pred_check_branch
          %127 = sbr.rel (%p125) target = $region20
        $region19: #{tpu_custom_call.1} parent=15 // pred_region
          %s128 = sand.u32 %s36, 1
          %s129 = scalar_lea.sflag [#allocation3], %s128
          %s130 = sand.u32 %s36, 1
          %s131 = smul.addr %s130, 24
          %s132 = scalar_lea.vmem [#allocation2], %s131
          %s134 = ssub.s32 384, 384
          %135 = vsyncadd %s129, %s134
          %s136 = smul.addr %s21, 6
          %s137 = smul.addr %s136, 64
          %s138 = scalar_lea.hbm %s0, %s137
          %s139 = sshll.u32 %s132, 4
          %s140 = int_to_ptr.vmem [resolvable:$true] %s139
          %145 = dma.hbm_to_vmem [thread:$0]  %s138, 384, %s140, %s129, 192, 192, 12
        $region20: #{tpu_custom_call.1} parent=15 // pred_fallthru
          _
        // Predicated region
        $region21: #{tpu_custom_call.1} parent=15 // pred_check
          %p146 = pneg %p72
        $region22: #{tpu_custom_call.1} parent=15 // pred_check_branch
          %148 = sbr.rel (%p146) target = $region24
        $region23: #{tpu_custom_call.1} parent=15 // pred_region
          %p149 = scmp.lt.s32.totalorder %s21, 1
          %s150 = scalar_select %p149, %s21, 1
          %s151 = smul.addr %s150, 3
          %s152 = smul.addr %s151, 4
          %s153 = scalar_lea.vmem %s1, %s152
        $region24: #{tpu_custom_call.1} parent=15 // pred_fallthru
          _
      $region16: #{tpu_custom_call.1} parent=5 // pred_fallthru
        _
      %p154 = scmp.le.s32.totalorder 1, %s14
      %p155 = scmp.lt.s32.totalorder %s14, 3
      %p156 = pnand %p154, %p155
      %p157 = pneg %p156
      // Predicated region
      $region25: #{tpu_custom_call.1} parent=5 // pred_check
        _
      $region26: #{tpu_custom_call.1} parent=5 // pred_check_branch
        %159 = sbr.rel (%p156) target = $region28
      $region27: #{tpu_custom_call.1} parent=5 // pred_region
        %s160 = ssub.s32 %s14, 1
        %s161 = sand.u32 %s39, 1
        %s162 = scalar_lea.sflag [#allocation3], %s161
        %s163 = sand.u32 %s39, 1
        %s164 = smul.addr %s163, 24
        %s165 = scalar_lea.vmem [#allocation2], %s164
        // Predicated region
        $region29: #{tpu_custom_call.1} parent=27 // pred_check
          %p166 = pneg %p52
        $region30: #{tpu_custom_call.1} parent=27 // pred_check_branch
          %168 = sbr.rel (%p166) target = $region32
        $region31: #{tpu_custom_call.1} parent=27 // pred_region
          %169 = dma.done %s162, 384
        $region32: #{tpu_custom_call.1} parent=27 // pred_fallthru
          _
        %s170 = sand.u32 %s39, 1
        %s171 = scalar_lea.sflag [#allocation3], %s170
        %s172 = sand.u32 %s39, 1
        %s173 = smul.addr %s172, 24
        %s174 = scalar_lea.vmem [#allocation2], %s173
        %p175 = pneg %p52
        %p176 = pneg %p49
        %p177 = scmp.lt.s32.totalorder %s23, 1
        %s178 = scalar_select %p177, %s23, 1
        %s179 = smul.addr %s178, 3
        %s180 = smul.addr %s179, 4
        %s181 = scalar_lea.vmem %s1, %s180
        %p182 = pneg %p78
        %p183 = pneg %p75
        %p184 = pneg %p106
        %p185 = pneg %p103
        %s186 = sand.u32 %s93, 1
        %s187 = scalar_lea.sflag [#allocation4], %s186
        %s188 = sand.u32 %s93, 1
        %s189 = smul.addr %s188, 8
        %s190 = scalar_lea.vmem [#allocation5], %s189
        %p191 = scmp.lt.s32.totalorder %s23, 1
        %s192 = scalar_select %p191, %s23, 1
        %s193 = smul.addr %s192, 3
        %s194 = smul.addr %s193, 4
        %s195 = scalar_lea.vmem %s1, %s194
        %s196 = smul.u32 2, %s24
        %v198 = vlaneseq
        %v199 = vand.u32 %v198, 127
        %v200 = vadd.s32 %v199, 128
        %s201 = smul.u32 %s24, 256
        %v202 = vstv %s201
        %v203 = vadd.s32 %v199, %v202
        %v204 = vadd.s32 %v200, %v202
        %v205 = vcvt.s32.f32 %v203
        %v206 = vcvt.s32.f32 %v204
        %v207 = vrcp.pop 16.0
        %v208 = vmul.f32 %v205, %v207
        %v209 = vmul.f32 %v206, %v207
        %v210 = vfloor.f32 %v208
        %v211 = vfloor.f32 %v209
        %v212 = vmul.f32 %v210, 16.0
        %v213 = vmul.f32 %v211, 16.0
        %v214 = vsub.f32 %v205, %v212
        %v215 = vsub.f32 %v206, %v213
        %v216 = vmul.f32 %v214, %v207
        %v217 = vmul.f32 %v215, %v207
        %v218 = vsub.f32 %v216, 0.5
        %v219 = vsub.f32 %v217, 0.5
        %v220 = vmul.f32 %v218, 2.0
        %v221 = vmul.f32 %v219, 2.0
        %v222 = vmul.f32 %v210, %v207
        %v223 = vmul.f32 %v211, %v207
        %v224 = vsub.f32 %v222, 0.5
        %v225 = vsub.f32 %v223, 0.5
        %v226 = vmul.f32 %v224, 2.0
        %v227 = vmul.f32 %v225, 2.0
        %v228 = vld [vmem:[%s195] sm:$0xf]
        %s229 = scalar_lea.vmem %s195, 4
        %v230 = vld [vmem:[%s229] sm:$0xf]
        %s231 = scalar_lea.vmem %s195, 8
        %v232 = vld [vmem:[%s231] sm:$0xf]
        %234 = vset.pattern.permute.xlu0 0
        %235 = vperm.xlu0 %234, %v228
        %v236 = vpop.permute.xlu0 %235
        %v238 = vsub.f32 %v220, %v236
        %v239 = vsub.f32 %v221, %v236
        %241 = vset.pattern.permute.xlu0 0
        %242 = vperm.xlu0 %241, %v230
        %v243 = vpop.permute.xlu0 %242
        %v245 = vsub.f32 %v226, %v243
        %v246 = vsub.f32 %v227, %v243
        %v247 = vmul.f32 %v238, %v238
        %v248 = vmul.f32 %v239, %v239
        %v249 = vmul.f32 %v245, %v245
        %v250 = vmul.f32 %v246, %v246
        %v251 = vadd.f32 %v247, %v249
        %v252 = vadd.f32 %v248, %v250
        %v253 = vrsqrt.pop %v251
        %v254 = vmul.f32 %v251, %v253
        %vm255 = vcmp.eq.f32.partialorder %v251, inf
        %v256 = vsel %vm255, %v251, %v254
        %vm257 = vcmp.eq.f32.partialorder %v251, 0.0
        %v258 = vand.u32 %v251, 2147483648
        %v259 = vsel %vm257, %v258, %v256
        %v260 = vrsqrt.pop %v252
        %v261 = vmul.f32 %v252, %v260
        %vm262 = vcmp.eq.f32.partialorder %v252, inf
        %v263 = vsel %vm262, %v252, %v261
        %vm264 = vcmp.eq.f32.partialorder %v252, 0.0
        %v265 = vand.u32 %v252, 2147483648
        %v266 = vsel %vm264, %v265, %v263
        %v267 = vadd.f32 %v232, 0.15
        %v268 = vsub.f32 0.0, %v259
        %v269 = vsub.f32 0.0, %v266
        %v270 = vmul.f32 %v268, 7.213475
        %v271 = vmul.f32 %v269, 7.213475
        %v272 = vmul.f32 %v270, 1.442695
        %v273 = vpow.pop %v272
        %v274 = vmul.f32 %v271, 1.442695
        %v275 = vpow.pop %v274
        %277 = vset.pattern.permute.xlu0 0
        %278 = vperm.xlu0 %277, %v267
        %v279 = vpop.permute.xlu0 %278
        %v281 = vmul.f32 %v279, %v273
        %v282 = vmul.f32 %v279, %v275
        %v283 = vand.u32 2147483647, %v281
        %vm284 = vcmp.le.f32.partialorder %v283, 0.7853982
        %vm285 = vcmp.lt.s32.totalorder %v281, 0
        %v286 = vand.u32 %v281, 2139095040
        %v287 = vshrl.u32 %v286, 23
        %v288 = vsub.s32 %v287, 127
        %v289 = vand.u32 2147483647, %v281
        %v290 = vand.u32 %v289, 8388607
        %v291 = vor.u32 %v290, 8388608
        %v292 = vsub.s32 0, %v291
        %v293 = vadd.s32 %v288, 1
        %vm294 = vcmp.gt.s32.totalorder %v293, 0
        %v295 = vsel %vm294, %v293, 0
        %v296 = vshrl.u32 %v295, 5
        %v297 = vand.u32 %v295, 31
        %v298 = vsub.s32 32, %v297
        %v299 = vshrl.u32 683565275, %v298
        %v300 = vshll.u32 683565275, %v297
        %v301 = vshrl.u32 2475754826, %v298
        %v302 = vor.u32 %v300, %v301
        %v303 = vshll.u32 2475754826, %v297
        %v304 = vshrl.u32 2131351028, %v298
        %v305 = vor.u32 %v303, %v304
        %v306 = vshll.u32 2131351028, %v297
        %v307 = vshrl.u32 2102212464, %v298
        %v308 = vor.u32 %v306, %v307
        %v309 = vshll.u32 2102212464, %v297
        %v310 = vshrl.u32 920167782, %v298
        %v311 = vor.u32 %v309, %v310
        %v312 = vshll.u32 920167782, %v297
        %v313 = vshrl.u32 1326507024, %v298
        %v314 = vor.u32 %v312, %v313
        %vm315 = vcmp.lt.s32.totalorder %v296, 1
        %vm316 = vcmp.lt.s32.totalorder %v296, 2
        %vm317 = vcmp.lt.s32.totalorder %v296, 3
        %vm318 = vcmp.lt.s32.totalorder %v296, 4
        %v319 = vsel %vm315, %v299, %v302
        %v320 = vsel %vm318, %v308, 2102212464
        %v321 = vsel %vm317, %v305, %v320
        %v322 = vsel %vm316, %v319, %v321
        %v323 = vsel %vm315, %v302, %v305
        %v324 = vsel %vm318, %v311, 920167782
        %v325 = vsel %vm317, %v308, %v324
        %v326 = vsel %vm316, %v323, %v325
        %v327 = vsel %vm315, %v305, %v308
        %v328 = vsel %vm318, %v314, 1326507024
        %v329 = vsel %vm317, %v311, %v328
        %v330 = vsel %vm316, %v327, %v329
        %v331 = vshll.u32 %v291, 8
        %v332 = vmul.u32.u64.compose %v331, %v330
        %v333 = vextract.low.u32 %v332
        %v334 = vextract.high.u32 %v332
        %v335 = vmul.u32.u64.compose %v331, %v326
        %v336 = vextract.low.u32 %v335
        %v337 = vextract.high.u32 %v335
        %v338 = vmul.u32 %v331, %v322
        %v339 = vadd.s32 %v334, %v336
        %vm340 = vc.u32 %v334, %v336
        %v341 = vadd.s32 %v337, 1
        %v342 = vsel %vm340, %v341, %v337
        %v343 = vadd.s32 %v338, %v342
        %v344 = vadd.s32 %v343, 536870912
        %v345 = vshrl.u32 %v344, 30
        %v346 = vshll.u32 %v345, 30
        %v347 = vsub.s32 %v343, %v346
        %vm348 = vcmp.lt.s32.totalorder %v347, 0
        %v349 = vsub.s32 0, %v347
        %v350 = vsel %vm348, %v349, %v347
        %v351 = vclz %v350
        %v352 = vsub.s32 %v351, 2
        %vm353 = vcmp.gt.s32.totalorder 0, %v352
        %v354 = vsel %vm353, 0, %v352
        %v355 = vsub.s32 32, %v354
        %v356 = vshll.u32 %v347, %v354
        %v357 = vshrl.u32 %v339, %v355
        %v358 = vor.u32 %v356, %v357
        %v359 = vsub.s32 4294967266, %v354
        %v360 = vadd.s32 %v359, 127
        %v361 = vshll.u32 %v360, 23
        %v362 = vor.u32 4788187, %v361
        %v363 = vand.u32 2147483647, %v362
        %v365 = vcvt.s32.f32 %v358
        %v366 = vmul.f32 %v365, %v363
        %v367 = vxor.u32 %v366, 2147483648
        %v368 = vsel %vm285, %v367, %v366
        %v369 = vsub.s32 4, %v345
        %v370 = vsel %vm285, %v369, %v345
        %v371 = vsel %vm284, %v281, %v368
        %v372 = vsel %vm284, 0, %v370
        %v373 = vcosq.f32.pop %v371
        %v374 = vsinq.f32.pop %v371
        %vm375 = vweird.f32 %v281
        %v376 = vand.u32 %v372, 3
        %vm377 = vcmp.lt.s32.totalorder %v376, 2
        %vm378 = vcmp.eq.s32.totalorder %v376, 0
        %v379 = vxor.u32 %v374, 2147483648
        %v380 = vsel %vm378, %v373, %v379
        %vm381 = vcmp.eq.s32.totalorder %v376, 2
        %v382 = vxor.u32 %v373, 2147483648
        %v383 = vsel %vm381, %v382, %v374
        %v384 = vsel %vm377, %v380, %v383
        %v385 = vsel %vm375, nan, %v384
        %v386 = vand.u32 2147483647, %v282
        %vm387 = vcmp.le.f32.partialorder %v386, 0.7853982
        %vm388 = vcmp.lt.s32.totalorder %v282, 0
        %v389 = vand.u32 %v282, 2139095040
        %v390 = vshrl.u32 %v389, 23
        %v391 = vsub.s32 %v390, 127
        %v392 = vand.u32 2147483647, %v282
        %v393 = vand.u32 %v392, 8388607
        %v394 = vor.u32 %v393, 8388608
        %v395 = vsub.s32 0, %v394
        %v396 = vadd.s32 %v391, 1
        %vm397 = vcmp.gt.s32.totalorder %v396, 0
        %v398 = vsel %vm397, %v396, 0
        %v399 = vshrl.u32 %v398, 5
        %v400 = vand.u32 %v398, 31
        %v401 = vsub.s32 32, %v400
        %v402 = vshrl.u32 683565275, %v401
        %v403 = vshll.u32 683565275, %v400
        %v404 = vshrl.u32 2475754826, %v401
        %v405 = vor.u32 %v403, %v404
        %v406 = vshll.u32 2475754826, %v400
        %v407 = vshrl.u32 2131351028, %v401
        %v408 = vor.u32 %v406, %v407
        %v409 = vshll.u32 2131351028, %v400
        %v410 = vshrl.u32 2102212464, %v401
        %v411 = vor.u32 %v409, %v410
        %v412 = vshll.u32 2102212464, %v400
        %v413 = vshrl.u32 920167782, %v401
        %v414 = vor.u32 %v412, %v413
        %v415 = vshll.u32 920167782, %v400
        %v416 = vshrl.u32 1326507024, %v401
        %v417 = vor.u32 %v415, %v416
        %vm418 = vcmp.lt.s32.totalorder %v399, 1
        %vm419 = vcmp.lt.s32.totalorder %v399, 2
        %vm420 = vcmp.lt.s32.totalorder %v399, 3
        %vm421 = vcmp.lt.s32.totalorder %v399, 4
        %v422 = vsel %vm418, %v402, %v405
        %v423 = vsel %vm421, %v411, 2102212464
        %v424 = vsel %vm420, %v408, %v423
        %v425 = vsel %vm419, %v422, %v424
        %v426 = vsel %vm418, %v405, %v408
        %v427 = vsel %vm421, %v414, 920167782
        %v428 = vsel %vm420, %v411, %v427
        %v429 = vsel %vm419, %v426, %v428
        %v430 = vsel %vm418, %v408, %v411
        %v431 = vsel %vm421, %v417, 1326507024
        %v432 = vsel %vm420, %v414, %v431
        %v433 = vsel %vm419, %v430, %v432
        %v434 = vshll.u32 %v394, 8
        %v435 = vmul.u32.u64.compose %v434, %v433
        %v436 = vextract.low.u32 %v435
        %v437 = vextract.high.u32 %v435
        %v438 = vmul.u32.u64.compose %v434, %v429
        %v439 = vextract.low.u32 %v438
        %v440 = vextract.high.u32 %v438
        %v441 = vmul.u32 %v434, %v425
        %v442 = vadd.s32 %v437, %v439
        %vm443 = vc.u32 %v437, %v439
        %v444 = vadd.s32 %v440, 1
        %v445 = vsel %vm443, %v444, %v440
        %v446 = vadd.s32 %v441, %v445
        %v447 = vadd.s32 %v446, 536870912
        %v448 = vshrl.u32 %v447, 30
        %v449 = vshll.u32 %v448, 30
        %v450 = vsub.s32 %v446, %v449
        %vm451 = vcmp.lt.s32.totalorder %v450, 0
        %v452 = vsub.s32 0, %v450
        %v453 = vsel %vm451, %v452, %v450
        %v454 = vclz %v453
        %v455 = vsub.s32 %v454, 2
        %vm456 = vcmp.gt.s32.totalorder 0, %v455
        %v457 = vsel %vm456, 0, %v455
        %v458 = vsub.s32 32, %v457
        %v459 = vshll.u32 %v450, %v457
        %v460 = vshrl.u32 %v442, %v458
        %v461 = vor.u32 %v459, %v460
        %v462 = vsub.s32 4294967266, %v457
        %v463 = vadd.s32 %v462, 127
        %v464 = vshll.u32 %v463, 23
        %v465 = vor.u32 4788187, %v464
        %v466 = vand.u32 2147483647, %v465
        %v468 = vcvt.s32.f32 %v461
        %v469 = vmul.f32 %v468, %v466
        %v470 = vxor.u32 %v469, 2147483648
        %v471 = vsel %vm388, %v470, %v469
        %v472 = vsub.s32 4, %v448
        %v473 = vsel %vm388, %v472, %v448
        %v474 = vsel %vm387, %v282, %v471
        %v475 = vsel %vm387, 0, %v473
        %v476 = vcosq.f32.pop %v474
        %v477 = vsinq.f32.pop %v474
        %vm478 = vweird.f32 %v282
        %v479 = vand.u32 %v475, 3
        %vm480 = vcmp.lt.s32.totalorder %v479, 2
        %vm481 = vcmp.eq.s32.totalorder %v479, 0
        %v482 = vxor.u32 %v477, 2147483648
        %v483 = vsel %vm481, %v476, %v482
        %vm484 = vcmp.eq.s32.totalorder %v479, 2
        %v485 = vxor.u32 %v476, 2147483648
        %v486 = vsel %vm484, %v485, %v477
        %v487 = vsel %vm480, %v483, %v486
        %v488 = vsel %vm478, nan, %v487
        %v489 = vand.u32 2147483647, %v281
        %vm490 = vcmp.le.f32.partialorder %v489, 0.7853982
        %vm491 = vcmp.lt.s32.totalorder %v281, 0
        %v492 = vand.u32 %v281, 2139095040
        %v493 = vshrl.u32 %v492, 23
        %v494 = vsub.s32 %v493, 127
        %v495 = vand.u32 2147483647, %v281
        %v496 = vand.u32 %v495, 8388607
        %v497 = vor.u32 %v496, 8388608
        %v498 = vsub.s32 0, %v497
        %v499 = vadd.s32 %v494, 1
        %vm500 = vcmp.gt.s32.totalorder %v499, 0
        %v501 = vsel %vm500, %v499, 0
        %v502 = vshrl.u32 %v501, 5
        %v503 = vand.u32 %v501, 31
        %v504 = vsub.s32 32, %v503
        %v505 = vshrl.u32 683565275, %v504
        %v506 = vshll.u32 683565275, %v503
        %v507 = vshrl.u32 2475754826, %v504
        %v508 = vor.u32 %v506, %v507
        %v509 = vshll.u32 2475754826, %v503
        %v510 = vshrl.u32 2131351028, %v504
        %v511 = vor.u32 %v509, %v510
        %v512 = vshll.u32 2131351028, %v503
        %v513 = vshrl.u32 2102212464, %v504
        %v514 = vor.u32 %v512, %v513
        %v515 = vshll.u32 2102212464, %v503
        %v516 = vshrl.u32 920167782, %v504
        %v517 = vor.u32 %v515, %v516
        %v518 = vshll.u32 920167782, %v503
        %v519 = vshrl.u32 1326507024, %v504
        %v520 = vor.u32 %v518, %v519
        %vm521 = vcmp.lt.s32.totalorder %v502, 1
        %vm522 = vcmp.lt.s32.totalorder %v502, 2
        %vm523 = vcmp.lt.s32.totalorder %v502, 3
        %vm524 = vcmp.lt.s32.totalorder %v502, 4
        %v525 = vsel %vm521, %v505, %v508
        %v526 = vsel %vm524, %v514, 2102212464
        %v527 = vsel %vm523, %v511, %v526
        %v528 = vsel %vm522, %v525, %v527
        %v529 = vsel %vm521, %v508, %v511
        %v530 = vsel %vm524, %v517, 920167782
        %v531 = vsel %vm523, %v514, %v530
        %v532 = vsel %vm522, %v529, %v531
        %v533 = vsel %vm521, %v511, %v514
        %v534 = vsel %vm524, %v520, 1326507024
        %v535 = vsel %vm523, %v517, %v534
        %v536 = vsel %vm522, %v533, %v535
        %v537 = vshll.u32 %v497, 8
        %v538 = vmul.u32.u64.compose %v537, %v536
        %v539 = vextract.low.u32 %v538
        %v540 = vextract.high.u32 %v538
        %v541 = vmul.u32.u64.compose %v537, %v532
        %v542 = vextract.low.u32 %v541
        %v543 = vextract.high.u32 %v541
        %v544 = vmul.u32 %v537, %v528
        %v545 = vadd.s32 %v540, %v542
        %vm546 = vc.u32 %v540, %v542
        %v547 = vadd.s32 %v543, 1
        %v548 = vsel %vm546, %v547, %v543
        %v549 = vadd.s32 %v544, %v548
        %v550 = vadd.s32 %v549, 536870912
        %v551 = vshrl.u32 %v550, 30
        %v552 = vshll.u32 %v551, 30
        %v553 = vsub.s32 %v549, %v552
        %vm554 = vcmp.lt.s32.totalorder %v553, 0
        %v555 = vsub.s32 0, %v553
        %v556 = vsel %vm554, %v555, %v553
        %v557 = vclz %v556
        %v558 = vsub.s32 %v557, 2
        %vm559 = vcmp.gt.s32.totalorder 0, %v558
        %v560 = vsel %vm559, 0, %v558
        %v561 = vsub.s32 32, %v560
        %v562 = vshll.u32 %v553, %v560
        %v563 = vshrl.u32 %v545, %v561
        %v564 = vor.u32 %v562, %v563
        %v565 = vsub.s32 4294967266, %v560
        %v566 = vadd.s32 %v565, 127
        %v567 = vshll.u32 %v566, 23
        %v568 = vor.u32 4788187, %v567
        %v569 = vand.u32 2147483647, %v568
        %v571 = vcvt.s32.f32 %v564
        %v572 = vmul.f32 %v571, %v569
        %v573 = vxor.u32 %v572, 2147483648
        %v574 = vsel %vm491, %v573, %v572
        %v575 = vsub.s32 4, %v551
        %v576 = vsel %vm491, %v575, %v551
        %v577 = vsel %vm490, %v281, %v574
        %v578 = vsel %vm490, 0, %v576
        %v579 = vcosq.f32.pop %v577
        %v580 = vsinq.f32.pop %v577
        %vm581 = vweird.f32 %v281
        %v582 = vadd.s32 %v578, 3
        %v583 = vand.u32 %v582, 3
        %vm584 = vcmp.lt.s32.totalorder %v583, 2
        %vm585 = vcmp.eq.s32.totalorder %v583, 0
        %v586 = vxor.u32 %v580, 2147483648
        %v587 = vsel %vm585, %v579, %v586
        %vm588 = vcmp.eq.s32.totalorder %v583, 2
        %v589 = vxor.u32 %v579, 2147483648
        %v590 = vsel %vm588, %v589, %v580
        %v591 = vsel %vm584, %v587, %v590
        %v592 = vsel %vm581, nan, %v591
        %v593 = vand.u32 2147483647, %v282
        %vm594 = vcmp.le.f32.partialorder %v593, 0.7853982
        %vm595 = vcmp.lt.s32.totalorder %v282, 0
        %v596 = vand.u32 %v282, 2139095040
        %v597 = vshrl.u32 %v596, 23
        %v598 = vsub.s32 %v597, 127
        %v599 = vand.u32 2147483647, %v282
        %v600 = vand.u32 %v599, 8388607
        %v601 = vor.u32 %v600, 8388608
        %v602 = vsub.s32 0, %v601
        %v603 = vadd.s32 %v598, 1
        %vm604 = vcmp.gt.s32.totalorder %v603, 0
        %v605 = vsel %vm604, %v603, 0
        %v606 = vshrl.u32 %v605, 5
        %v607 = vand.u32 %v605, 31
        %v608 = vsub.s32 32, %v607
        %v609 = vshrl.u32 683565275, %v608
        %v610 = vshll.u32 683565275, %v607
        %v611 = vshrl.u32 2475754826, %v608
        %v612 = vor.u32 %v610, %v611
        %v613 = vshll.u32 2475754826, %v607
        %v614 = vshrl.u32 2131351028, %v608
        %v615 = vor.u32 %v613, %v614
        %v616 = vshll.u32 2131351028, %v607
        %v617 = vshrl.u32 2102212464, %v608
        %v618 = vor.u32 %v616, %v617
        %v619 = vshll.u32 2102212464, %v607
        %v620 = vshrl.u32 920167782, %v608
        %v621 = vor.u32 %v619, %v620
        %v622 = vshll.u32 920167782, %v607
        %v623 = vshrl.u32 1326507024, %v608
        %v624 = vor.u32 %v622, %v623
        %vm625 = vcmp.lt.s32.totalorder %v606, 1
        %vm626 = vcmp.lt.s32.totalorder %v606, 2
        %vm627 = vcmp.lt.s32.totalorder %v606, 3
        %vm628 = vcmp.lt.s32.totalorder %v606, 4
        %v629 = vsel %vm625, %v609, %v612
        %v630 = vsel %vm628, %v618, 2102212464
        %v631 = vsel %vm627, %v615, %v630
        %v632 = vsel %vm626, %v629, %v631
        %v633 = vsel %vm625, %v612, %v615
        %v634 = vsel %vm628, %v621, 920167782
        %v635 = vsel %vm627, %v618, %v634
        %v636 = vsel %vm626, %v633, %v635
        %v637 = vsel %vm625, %v615, %v618
        %v638 = vsel %vm628, %v624, 1326507024
        %v639 = vsel %vm627, %v621, %v638
        %v640 = vsel %vm626, %v637, %v639
        %v641 = vshll.u32 %v601, 8
        %v642 = vmul.u32.u64.compose %v641, %v640
        %v643 = vextract.low.u32 %v642
        %v644 = vextract.high.u32 %v642
        %v645 = vmul.u32.u64.compose %v641, %v636
        %v646 = vextract.low.u32 %v645
        %v647 = vextract.high.u32 %v645
        %v648 = vmul.u32 %v641, %v632
        %v649 = vadd.s32 %v644, %v646
        %vm650 = vc.u32 %v644, %v646
        %v651 = vadd.s32 %v647, 1
        %v652 = vsel %vm650, %v651, %v647
        %v653 = vadd.s32 %v648, %v652
        %v654 = vadd.s32 %v653, 536870912
        %v655 = vshrl.u32 %v654, 30
        %v656 = vshll.u32 %v655, 30
        %v657 = vsub.s32 %v653, %v656
        %vm658 = vcmp.lt.s32.totalorder %v657, 0
        %v659 = vsub.s32 0, %v657
        %v660 = vsel %vm658, %v659, %v657
        %v661 = vclz %v660
        %v662 = vsub.s32 %v661, 2
        %vm663 = vcmp.gt.s32.totalorder 0, %v662
        %v664 = vsel %vm663, 0, %v662
        %v665 = vsub.s32 32, %v664
        %v666 = vshll.u32 %v657, %v664
        %v667 = vshrl.u32 %v649, %v665
        %v668 = vor.u32 %v666, %v667
        %v669 = vsub.s32 4294967266, %v664
        %v670 = vadd.s32 %v669, 127
        %v671 = vshll.u32 %v670, 23
        %v672 = vor.u32 4788187, %v671
        %v673 = vand.u32 2147483647, %v672
        %v675 = vcvt.s32.f32 %v668
        %v676 = vmul.f32 %v675, %v673
        %v677 = vxor.u32 %v676, 2147483648
        %v678 = vsel %vm595, %v677, %v676
        %v679 = vsub.s32 4, %v655
        %v680 = vsel %vm595, %v679, %v655
        %v681 = vsel %vm594, %v282, %v678
        %v682 = vsel %vm594, 0, %v680
        %v683 = vcosq.f32.pop %v681
        %v684 = vsinq.f32.pop %v681
        %vm685 = vweird.f32 %v282
        %v686 = vadd.s32 %v682, 3
        %v687 = vand.u32 %v686, 3
        %vm688 = vcmp.lt.s32.totalorder %v687, 2
        %vm689 = vcmp.eq.s32.totalorder %v687, 0
        %v690 = vxor.u32 %v684, 2147483648
        %v691 = vsel %vm689, %v683, %v690
        %vm692 = vcmp.eq.s32.totalorder %v687, 2
        %v693 = vxor.u32 %v683, 2147483648
        %v694 = vsel %vm692, %v693, %v684
        %v695 = vsel %vm688, %v691, %v694
        %v696 = vsel %vm685, nan, %v695
        %v697 = vmul.f32 %v385, %v238
        %v698 = vmul.f32 %v488, %v239
        %v699 = vadd.f32 %v236, %v697
        %v700 = vadd.f32 %v236, %v698
        %v701 = vmul.f32 %v592, %v245
        %v702 = vmul.f32 %v696, %v246
        %v703 = vsub.f32 %v699, %v701
        %v704 = vsub.f32 %v700, %v702
        %v705 = vsub.f32 %v703, %v220
        %v706 = vsub.f32 %v704, %v221
        %v707 = vmul.f32 %v592, %v238
        %v708 = vmul.f32 %v696, %v239
        %v709 = vadd.f32 %v243, %v707
        %v710 = vadd.f32 %v243, %v708
        %v711 = vmul.f32 %v385, %v245
        %v712 = vmul.f32 %v488, %v246
        %v713 = vadd.f32 %v709, %v711
        %v714 = vadd.f32 %v710, %v712
        %v715 = vsub.f32 %v713, %v226
        %v716 = vsub.f32 %v714, %v227
        %vm717 = vcmask 1043456
        %v718 = vsel %vm717, %v705, -inf
        %v719 = vrot.slane %v718, 4
        %v720 = vmax.f32 %v718, %v719
        %v721 = vrot.slane %v720, 2
        %v722 = vmax.f32 %v720, %v721
        %v723 = vrot.slane %v722, 1
        %v724 = vmax.f32 %v722, %v723
        %v725 = vsel %vm717, %v706, -inf
        %v726 = vrot.slane %v725, 4
        %v727 = vmax.f32 %v725, %v726
        %v728 = vrot.slane %v727, 2
        %v729 = vmax.f32 %v727, %v728
        %v730 = vrot.slane %v729, 1
        %v731 = vmax.f32 %v729, %v730
        %v732 = vadd.f32 %v724, %v220
        %v733 = vadd.f32 %v731, %v221
        %v734 = vsel %vm717, %v715, -inf
        %v735 = vrot.slane %v734, 4
        %v736 = vmax.f32 %v734, %v735
        %v737 = vrot.slane %v736, 2
        %v738 = vmax.f32 %v736, %v737
        %v739 = vrot.slane %v738, 1
        %v740 = vmax.f32 %v738, %v739
        %v741 = vsel %vm717, %v716, -inf
        %v742 = vrot.slane %v741, 4
        %v743 = vmax.f32 %v741, %v742
        %v744 = vrot.slane %v743, 2
        %v745 = vmax.f32 %v743, %v744
        %v746 = vrot.slane %v745, 1
        %v747 = vmax.f32 %v745, %v746
        %v748 = vadd.f32 %v740, %v226
        %v749 = vadd.f32 %v747, %v227
        %v750 = vadd.f32 %v732, 1.0
        %v751 = vadd.f32 %v733, 1.0
        %v752 = vmul.f32 %v750, 16.0
        %v753 = vmul.f32 %v751, 16.0
        %v754 = vsub.f32 %v752, 1.0
        %v755 = vsub.f32 %v753, 1.0
        %v756 = vmul.f32 %v754, 0.5
        %v757 = vmul.f32 %v755, 0.5
        %v758 = vadd.f32 %v748, 1.0
        %v759 = vadd.f32 %v749, 1.0
        %v760 = vmul.f32 %v758, 16.0
        %v761 = vmul.f32 %v759, 16.0
        %v762 = vsub.f32 %v760, 1.0
        %v763 = vsub.f32 %v761, 1.0
        %v764 = vmul.f32 %v762, 0.5
        %v765 = vmul.f32 %v763, 0.5
        %v766 = vfloor.f32 %v756
        %v767 = vfloor.f32 %v757
        %v768 = vfloor.f32 %v764
        %v769 = vfloor.f32 %v765
        %v770 = vsub.f32 %v756, %v766
        %v771 = vsub.f32 %v757, %v767
        %v772 = vsub.f32 1.0, %v770
        %v773 = vsub.f32 1.0, %v771
        %v774 = vsub.f32 %v764, %v768
        %v775 = vsub.f32 %v765, %v769
        %v776 = vsub.f32 1.0, %v774
        %v777 = vsub.f32 1.0, %v775
        %v778 = vmul.f32 %v776, %v772
        %v779 = vmul.f32 %v777, %v773
        %v780 = vmul.f32 %v776, %v770
        %v781 = vmul.f32 %v777, %v771
        %v782 = vmul.f32 %v774, %v772
        %v783 = vmul.f32 %v775, %v773
        %v784 = vmul.f32 %v774, %v770
        %v785 = vmul.f32 %v775, %v771
        %v786 = vcvt.f32.s32.to.zero.pseudo %v766
        %v787 = vcvt.f32.s32.to.zero.pseudo %v767
        %v788 = vcvt.f32.s32.to.zero.pseudo %v768
        %v789 = vcvt.f32.s32.to.zero.pseudo %v769
        %vm790 = vcmp.ge.s32.totalorder %v786, 4294967295
        %vm791 = vcmp.ge.s32.totalorder %v787, 4294967295
        %vm792 = vcmp.le.s32.totalorder %v786, 15
        %vm793 = vcmp.le.s32.totalorder %v787, 15
        %vm794 = vmand %vm790, %vm792
        %vm795 = vmand %vm791, %vm793
        %vm796 = vcmp.ge.s32.totalorder %v788, 4294967295
        %vm797 = vcmp.ge.s32.totalorder %v789, 4294967295
        %vm798 = vmand %vm794, %vm796
        %vm799 = vmand %vm795, %vm797
        %vm800 = vcmp.le.s32.totalorder %v788, 15
        %vm801 = vcmp.le.s32.totalorder %v789, 15
        %vm802 = vmand %vm798, %vm800
        %vm803 = vmand %vm799, %vm801
        %v804 = vadd.s32 %v788, 1
        %v805 = vadd.s32 %v789, 1
        %v806 = vmul.u32 %v804, 18
        %v807 = vmul.u32 %v805, 18
        %v808 = vadd.s32 %v786, 1
        %v809 = vadd.s32 %v787, 1
        %v810 = vadd.s32 %v806, %v808
        %v811 = vadd.s32 %v807, %v809
        %v812 = vsel %vm802, %v810, 4294967295
        %v813 = vsel %vm803, %v811, 4294967295
        %v814 = vlaneseq
        %v815 = vshrl.u32 %v814, 7
        %v816 = vadd.s32 %v815, 8
        %v817 = vadd.s32 %v815, 16
        %v818 = vadd.s32 %v815, 24
        %v819 = vadd.s32 %v815, 32
        %v820 = vadd.s32 %v815, 40
        %v821 = vadd.s32 %v815, 48
        %v822 = vadd.s32 %v815, 56
        %v823 = vadd.s32 %v815, 64
        %v824 = vadd.s32 %v815, 72
        %v825 = vadd.s32 %v815, 80
        %v826 = vadd.s32 %v815, 88
        %v827 = vadd.s32 %v815, 96
        %v828 = vadd.s32 %v815, 104
        %v829 = vadd.s32 %v815, 112
        %v830 = vadd.s32 %v815, 120
        %v831 = vadd.s32 %v815, 128
        %v832 = vadd.s32 %v815, 136
        %v833 = vadd.s32 %v815, 144
        %v834 = vadd.s32 %v815, 152
        %v835 = vadd.s32 %v815, 160
        %v836 = vadd.s32 %v815, 168
        %v837 = vadd.s32 %v815, 176
        %v838 = vadd.s32 %v815, 184
        %v839 = vadd.s32 %v815, 192
        %v840 = vadd.s32 %v815, 200
        %v841 = vadd.s32 %v815, 208
        %v842 = vadd.s32 %v815, 216
        %v843 = vadd.s32 %v815, 224
        %v844 = vadd.s32 %v815, 232
        %v845 = vadd.s32 %v815, 240
        %v846 = vadd.s32 %v815, 248
        %v847 = vadd.s32 %v815, 256
        %v848 = vadd.s32 %v815, 264
        %v849 = vadd.s32 %v815, 272
        %v850 = vadd.s32 %v815, 280
        %v851 = vadd.s32 %v815, 288
        %v852 = vadd.s32 %v815, 296
        %v853 = vadd.s32 %v815, 304
        %v854 = vadd.s32 %v815, 312
        %v855 = vadd.s32 %v815, 320
        %vm856 = vcmp.eq.s32.totalorder %v815, %v812
        %vm857 = vcmp.eq.s32.totalorder %v815, %v813
        %vm858 = vcmp.eq.s32.totalorder %v816, %v812
        %vm859 = vcmp.eq.s32.totalorder %v816, %v813
        %vm860 = vcmp.eq.s32.totalorder %v817, %v812
        %vm861 = vcmp.eq.s32.totalorder %v817, %v813
        %vm862 = vcmp.eq.s32.totalorder %v818, %v812
        %vm863 = vcmp.eq.s32.totalorder %v818, %v813
        %vm864 = vcmp.eq.s32.totalorder %v819, %v812
        %vm865 = vcmp.eq.s32.totalorder %v819, %v813
        %vm866 = vcmp.eq.s32.totalorder %v820, %v812
        %vm867 = vcmp.eq.s32.totalorder %v820, %v813
        %vm868 = vcmp.eq.s32.totalorder %v821, %v812
        %vm869 = vcmp.eq.s32.totalorder %v821, %v813
        %vm870 = vcmp.eq.s32.totalorder %v822, %v812
        %vm871 = vcmp.eq.s32.totalorder %v822, %v813
        %vm872 = vcmp.eq.s32.totalorder %v823, %v812
        %vm873 = vcmp.eq.s32.totalorder %v823, %v813
        %vm874 = vcmp.eq.s32.totalorder %v824, %v812
        %vm875 = vcmp.eq.s32.totalorder %v824, %v813
        %vm876 = vcmp.eq.s32.totalorder %v825, %v812
        %vm877 = vcmp.eq.s32.totalorder %v825, %v813
        %vm878 = vcmp.eq.s32.totalorder %v826, %v812
        %vm879 = vcmp.eq.s32.totalorder %v826, %v813
        %vm880 = vcmp.eq.s32.totalorder %v827, %v812
        %vm881 = vcmp.eq.s32.totalorder %v827, %v813
        %vm882 = vcmp.eq.s32.totalorder %v828, %v812
        %vm883 = vcmp.eq.s32.totalorder %v828, %v813
        %vm884 = vcmp.eq.s32.totalorder %v829, %v812
        %vm885 = vcmp.eq.s32.totalorder %v829, %v813
        %vm886 = vcmp.eq.s32.totalorder %v830, %v812
        %vm887 = vcmp.eq.s32.totalorder %v830, %v813
        %vm888 = vcmp.eq.s32.totalorder %v831, %v812
        %vm889 = vcmp.eq.s32.totalorder %v831, %v813
        %vm890 = vcmp.eq.s32.totalorder %v832, %v812
        %vm891 = vcmp.eq.s32.totalorder %v832, %v813
        %vm892 = vcmp.eq.s32.totalorder %v833, %v812
        %vm893 = vcmp.eq.s32.totalorder %v833, %v813
        %vm894 = vcmp.eq.s32.totalorder %v834, %v812
        %vm895 = vcmp.eq.s32.totalorder %v834, %v813
        %vm896 = vcmp.eq.s32.totalorder %v835, %v812
        %vm897 = vcmp.eq.s32.totalorder %v835, %v813
        %vm898 = vcmp.eq.s32.totalorder %v836, %v812
        %vm899 = vcmp.eq.s32.totalorder %v836, %v813
        %vm900 = vcmp.eq.s32.totalorder %v837, %v812
        %vm901 = vcmp.eq.s32.totalorder %v837, %v813
        %vm902 = vcmp.eq.s32.totalorder %v838, %v812
        %vm903 = vcmp.eq.s32.totalorder %v838, %v813
        %vm904 = vcmp.eq.s32.totalorder %v839, %v812
        %vm905 = vcmp.eq.s32.totalorder %v839, %v813
        %vm906 = vcmp.eq.s32.totalorder %v840, %v812
        %vm907 = vcmp.eq.s32.totalorder %v840, %v813
        %vm908 = vcmp.eq.s32.totalorder %v841, %v812
        %vm909 = vcmp.eq.s32.totalorder %v841, %v813
        %vm910 = vcmp.eq.s32.totalorder %v842, %v812
        %vm911 = vcmp.eq.s32.totalorder %v842, %v813
        %vm912 = vcmp.eq.s32.totalorder %v843, %v812
        %vm913 = vcmp.eq.s32.totalorder %v843, %v813
        %vm914 = vcmp.eq.s32.totalorder %v844, %v812
        %vm915 = vcmp.eq.s32.totalorder %v844, %v813
        %vm916 = vcmp.eq.s32.totalorder %v845, %v812
        %vm917 = vcmp.eq.s32.totalorder %v845, %v813
        %vm918 = vcmp.eq.s32.totalorder %v846, %v812
        %vm919 = vcmp.eq.s32.totalorder %v846, %v813
        %vm920 = vcmp.eq.s32.totalorder %v847, %v812
        %vm921 = vcmp.eq.s32.totalorder %v847, %v813
        %vm922 = vcmp.eq.s32.totalorder %v848, %v812
        %vm923 = vcmp.eq.s32.totalorder %v848, %v813
        %vm924 = vcmp.eq.s32.totalorder %v849, %v812
        %vm925 = vcmp.eq.s32.totalorder %v849, %v813
        %vm926 = vcmp.eq.s32.totalorder %v850, %v812
        %vm927 = vcmp.eq.s32.totalorder %v850, %v813
        %vm928 = vcmp.eq.s32.totalorder %v851, %v812
        %vm929 = vcmp.eq.s32.totalorder %v851, %v813
        %vm930 = vcmp.eq.s32.totalorder %v852, %v812
        %vm931 = vcmp.eq.s32.totalorder %v852, %v813
        %vm932 = vcmp.eq.s32.totalorder %v853, %v812
        %vm933 = vcmp.eq.s32.totalorder %v853, %v813
        %vm934 = vcmp.eq.s32.totalorder %v854, %v812
        %vm935 = vcmp.eq.s32.totalorder %v854, %v813
        %vm936 = vcmp.eq.s32.totalorder %v855, %v812
        %vm937 = vcmp.eq.s32.totalorder %v855, %v813
        %v938 = vsel %vm856, 1.0, 0.0
        %v939 = vsel %vm857, 1.0, 0.0
        %v940 = vsel %vm858, 1.0, 0.0
        %v941 = vsel %vm859, 1.0, 0.0
        %v942 = vsel %vm860, 1.0, 0.0
        %v943 = vsel %vm861, 1.0, 0.0
        %v944 = vsel %vm862, 1.0, 0.0
        %v945 = vsel %vm863, 1.0, 0.0
        %v946 = vsel %vm864, 1.0, 0.0
        %v947 = vsel %vm865, 1.0, 0.0
        %v948 = vsel %vm866, 1.0, 0.0
        %v949 = vsel %vm867, 1.0, 0.0
        %v950 = vsel %vm868, 1.0, 0.0
        %v951 = vsel %vm869, 1.0, 0.0
        %v952 = vsel %vm870, 1.0, 0.0
        %v953 = vsel %vm871, 1.0, 0.0
        %v954 = vsel %vm872, 1.0, 0.0
        %v955 = vsel %vm873, 1.0, 0.0
        %v956 = vsel %vm874, 1.0, 0.0
        %v957 = vsel %vm875, 1.0, 0.0
        %v958 = vsel %vm876, 1.0, 0.0
        %v959 = vsel %vm877, 1.0, 0.0
        %v960 = vsel %vm878, 1.0, 0.0
        %v961 = vsel %vm879, 1.0, 0.0
        %v962 = vsel %vm880, 1.0, 0.0
        %v963 = vsel %vm881, 1.0, 0.0
        %v964 = vsel %vm882, 1.0, 0.0
        %v965 = vsel %vm883, 1.0, 0.0
        %v966 = vsel %vm884, 1.0, 0.0
        %v967 = vsel %vm885, 1.0, 0.0
        %v968 = vsel %vm886, 1.0, 0.0
        %v969 = vsel %vm887, 1.0, 0.0
        %v970 = vsel %vm888, 1.0, 0.0
        %v971 = vsel %vm889, 1.0, 0.0
        %v972 = vsel %vm890, 1.0, 0.0
        %v973 = vsel %vm891, 1.0, 0.0
        %v974 = vsel %vm892, 1.0, 0.0
        %v975 = vsel %vm893, 1.0, 0.0
        %v976 = vsel %vm894, 1.0, 0.0
        %v977 = vsel %vm895, 1.0, 0.0
        %v978 = vsel %vm896, 1.0, 0.0
        %v979 = vsel %vm897, 1.0, 0.0
        %v980 = vsel %vm898, 1.0, 0.0
        %v981 = vsel %vm899, 1.0, 0.0
        %v982 = vsel %vm900, 1.0, 0.0
        %v983 = vsel %vm901, 1.0, 0.0
        %v984 = vsel %vm902, 1.0, 0.0
        %v985 = vsel %vm903, 1.0, 0.0
        %v986 = vsel %vm904, 1.0, 0.0
        %v987 = vsel %vm905, 1.0, 0.0
        %v988 = vsel %vm906, 1.0, 0.0
        %v989 = vsel %vm907, 1.0, 0.0
        %v990 = vsel %vm908, 1.0, 0.0
        %v991 = vsel %vm909, 1.0, 0.0
        %v992 = vsel %vm910, 1.0, 0.0
        %v993 = vsel %vm911, 1.0, 0.0
        %v994 = vsel %vm912, 1.0, 0.0
        %v995 = vsel %vm913, 1.0, 0.0
        %v996 = vsel %vm914, 1.0, 0.0
        %v997 = vsel %vm915, 1.0, 0.0
        %v998 = vsel %vm916, 1.0, 0.0
        %v999 = vsel %vm917, 1.0, 0.0
        %v1000 = vsel %vm918, 1.0, 0.0
        %v1001 = vsel %vm919, 1.0, 0.0
        %v1002 = vsel %vm920, 1.0, 0.0
        %v1003 = vsel %vm921, 1.0, 0.0
        %v1004 = vsel %vm922, 1.0, 0.0
        %v1005 = vsel %vm923, 1.0, 0.0
        %v1006 = vsel %vm924, 1.0, 0.0
        %v1007 = vsel %vm925, 1.0, 0.0
        %v1008 = vsel %vm926, 1.0, 0.0
        %v1009 = vsel %vm927, 1.0, 0.0
        %v1010 = vsel %vm928, 1.0, 0.0
        %v1011 = vsel %vm929, 1.0, 0.0
        %v1012 = vsel %vm930, 1.0, 0.0
        %v1013 = vsel %vm931, 1.0, 0.0
        %v1014 = vsel %vm932, 1.0, 0.0
        %v1015 = vsel %vm933, 1.0, 0.0
        %v1016 = vsel %vm934, 1.0, 0.0
        %v1017 = vsel %vm935, 1.0, 0.0
        %v1018 = vsel %vm936, 1.0, 0.0
        %v1019 = vsel %vm937, 1.0, 0.0
        %v1020 = vpack.c.bf16 %v940, %v938
        %v1021 = vpack.c.bf16 %v941, %v939
        %v1022 = vpack.c.bf16 %v944, %v942
        %v1023 = vpack.c.bf16 %v945, %v943
        %v1024 = vpack.c.bf16 %v948, %v946
        %v1025 = vpack.c.bf16 %v949, %v947
        %v1026 = vpack.c.bf16 %v952, %v950
        %v1027 = vpack.c.bf16 %v953, %v951
        %v1028 = vpack.c.bf16 %v956, %v954
        %v1029 = vpack.c.bf16 %v957, %v955
        %v1030 = vpack.c.bf16 %v960, %v958
        %v1031 = vpack.c.bf16 %v961, %v959
        %v1032 = vpack.c.bf16 %v964, %v962
        %v1033 = vpack.c.bf16 %v965, %v963
        %v1034 = vpack.c.bf16 %v968, %v966
        %v1035 = vpack.c.bf16 %v969, %v967
        %v1036 = vpack.c.bf16 %v972, %v970
        %v1037 = vpack.c.bf16 %v973, %v971
        %v1038 = vpack.c.bf16 %v976, %v974
        %v1039 = vpack.c.bf16 %v977, %v975
        %v1040 = vpack.c.bf16 %v980, %v978
        %v1041 = vpack.c.bf16 %v981, %v979
        %v1042 = vpack.c.bf16 %v984, %v982
        %v1043 = vpack.c.bf16 %v985, %v983
        %v1044 = vpack.c.bf16 %v988, %v986
        %v1045 = vpack.c.bf16 %v989, %v987
        %v1046 = vpack.c.bf16 %v992, %v990
        %v1047 = vpack.c.bf16 %v993, %v991
        %v1048 = vpack.c.bf16 %v996, %v994
        %v1049 = vpack.c.bf16 %v997, %v995
        %v1050 = vpack.c.bf16 %v1000, %v998
        %v1051 = vpack.c.bf16 %v1001, %v999
        %v1052 = vpack.c.bf16 %v1004, %v1002
        %v1053 = vpack.c.bf16 %v1005, %v1003
        %v1054 = vpack.c.bf16 %v1008, %v1006
        %v1055 = vpack.c.bf16 %v1009, %v1007
        %v1056 = vpack.c.bf16 %v1012, %v1010
        %v1057 = vpack.c.bf16 %v1013, %v1011
        %v1058 = vpack.c.bf16 %v1016, %v1014
        %v1059 = vpack.c.bf16 %v1017, %v1015
        %v1060 = vpack.c.bf16 %v1018, %v1018
        %v1061 = vpack.c.bf16 %v1019, %v1019
        %v1062 = vld [vmem:[%s165] sm:$0xff]
        %v1063 = vld [vmem:[%s165 + $0x8] sm:$0xf]
        %v1064 = vld [vmem:[%s165 + $0xc] sm:$0xff]
        %v1065 = vld [vmem:[%s165 + $0x14] sm:$0xf]
        %v1070 = vunpack.c.l.b16 %v1062
        %v1071 = vunpack.c.h.b16 %v1062
        %v1072 = vunpack.c.l.b16 %v1063
        %v1073 = vunpack.c.l.b16 %v1064
        %v1074 = vunpack.c.h.b16 %v1064
        %v1075 = vunpack.c.l.b16 %v1065
        %v1076 = vpack.c.b16 %v1073, %v1070
        %v1077 = vpack.c.b16 %v1074, %v1071
        %v1078 = vpack.c.b16 %v1075, %v1072
        %vm1081 = vcmask 556032
        %v1083 = vsel %vm1081, %v1078, 0
        %vm1085 = vcmask 1041408
        %v1087 = vsel %vm1085, %v1060, 0
        %v1090 = vsel %vm1085, %v1061, 0
        %1092 = vmatprep.subr.bf16.mxu0 %v1021
        %1093 = vmatpush1.bf16.msra.mxu0 %v1020
        %1094 = vmatprep.subr.bf16.mxu0 %v1023
        %1095 = vmatpush1.bf16.msra.mxu0 %v1022
        %1096 = vmatprep.subr.bf16.mxu0 %v1025
        %1097 = vmatpush1.bf16.msra.mxu0 %v1024
        %1098 = vmatprep.subr.bf16.mxu0 %v1027
        %1099 = vmatpush1.bf16.msra.mxu0 %v1026
        %1100 = vmatprep.subr.bf16.mxu0 %v1029
        %1101 = vmatpush1.bf16.msra.mxu0 %v1028
        %1102 = vmatprep.subr.bf16.mxu0 %v1031
        %1103 = vmatpush1.bf16.msra.mxu0 %v1030
        %1104 = vmatprep.subr.bf16.mxu0 %v1033
        %1105 = vmatpush1.bf16.msra.mxu0 %v1032
        %1106 = vmatprep.subr.bf16.mxu0 %v1035
        %1107 = vmatpush1.bf16.msra.mxu0 %v1034
        %1108 = vmatprep.subr.bf16.mxu0 %v1037
        %1109 = vmatpush1.bf16.msra.mxu0 %v1036
        %1110 = vmatprep.subr.bf16.mxu0 %v1039
        %1111 = vmatpush1.bf16.msra.mxu0 %v1038
        %1112 = vmatprep.subr.bf16.mxu0 %v1041
        %1113 = vmatpush1.bf16.msra.mxu0 %v1040
        %1114 = vmatprep.subr.bf16.mxu0 %v1043
        %1115 = vmatpush1.bf16.msra.mxu0 %v1042
        %1116 = vmatprep.subr.bf16.mxu0 %v1045
        %1117 = vmatpush1.bf16.msra.mxu0 %v1044
        %1118 = vmatprep.subr.bf16.mxu0 %v1047
        %1119 = vmatpush1.bf16.msra.mxu0 %v1046
        %1120 = vmatprep.subr.bf16.mxu0 %v1049
        %1121 = vmatpush1.bf16.msra.mxu0 %v1048
        %1122 = vmatprep.subr.bf16.mxu0 %v1051
        %1123 = vmatpush1.bf16.msra.mxu0 %v1050
        %1124 = vmatprep.mubr.bf16.mxu0 %v1077
        %1125 = vmatmul.mubr.bf16.gmra.mrb[0].mxu0 %v1076
        %v1126 = vpop.f32.mrb[0].mxu0
        %v1127 = vadd.f32 0.0, %v1126
        %v1128 = vpop.f32.mrb[0].mxu0
        %v1129 = vadd.f32 0.0, %v1128
        %v1130 = vpop.f32.mrb[0].mxu0
        %v1131 = vadd.f32 0.0, %v1130
        %v1132 = vpop.f32.mrb[0].mxu0
        %v1133 = vadd.f32 0.0, %v1132
        %1134 = vdwg.mxu0
        %1135 = vmatprep.subr.bf16.mxu0 %v1053
        %1136 = vmatpush1.bf16.msra.mxu0 %v1052
        %1137 = vmatprep.subr.bf16.mxu0 %v1055
        %1138 = vmatpush1.bf16.msra.mxu0 %v1054
        %1139 = vmatprep.subr.bf16.mxu0 %v1057
        %1140 = vmatpush1.bf16.msra.mxu0 %v1056
        %1141 = vmatprep.subr.bf16.mxu0 %v1059
        %1142 = vmatpush1.bf16.msra.mxu0 %v1058
        %1143 = vmatprep.subr.bf16.mxu0 %v1090
        %1144 = vmatpush1.bf16.msra.mxu0 %v1087
        %1145 = vmatprep.subr.bf16.mxu0 0
        %1146 = vmatpush1.bf16.msra.mxu0 0
        %1147 = vmatprep.subr.bf16.mxu0 0
        %1148 = vmatpush1.bf16.msra.mxu0 0
        %1149 = vmatprep.subr.bf16.mxu0 0
        %1150 = vmatpush1.bf16.msra.mxu0 0
        %1151 = vmatprep.subr.bf16.mxu0 0
        %1152 = vmatpush1.bf16.msra.mxu0 0
        %1153 = vmatprep.subr.bf16.mxu0 0
        %1154 = vmatpush1.bf16.msra.mxu0 0
        %1155 = vmatprep.subr.bf16.mxu0 0
        %1156 = vmatpush1.bf16.msra.mxu0 0
        %1157 = vmatprep.subr.bf16.mxu0 0
        %1158 = vmatpush1.bf16.msra.mxu0 0
        %1159 = vmatprep.subr.bf16.mxu0 0
        %1160 = vmatpush1.bf16.msra.mxu0 0
        %1161 = vmatprep.subr.bf16.mxu0 0
        %1162 = vmatpush1.bf16.msra.mxu0 0
        %1163 = vmatprep.subr.bf16.mxu0 0
        %1164 = vmatpush1.bf16.msra.mxu0 0
        %1165 = vmatprep.subr.bf16.mxu0 0
        %1166 = vmatpush1.bf16.msra.mxu0 0
        %1167 = vmatprep.mubr.bf16.mxu0 0
        %1168 = vmatmul.mubr.bf16.gmra.mrb[0].mxu0 %v1083
        %v1169 = vpop.f32.mrb[0].mxu0
        %v1170 = vadd.f32 %v1127, %v1169
        %v1171 = vpop.f32.mrb[0].mxu0
        %v1172 = vadd.f32 %v1129, %v1171
        %v1173 = vpop.f32.mrb[0].mxu0
        %v1174 = vadd.f32 %v1131, %v1173
        %v1175 = vpop.f32.mrb[0].mxu0
        %v1176 = vadd.f32 %v1133, %v1175
        %1177 = vdwg.mxu0
        %v1178 = vmul.f32 %v778, %v1170
        %v1179 = vmul.f32 %v779, %v1172
        %v1180 = vmul.f32 %v780, %v1170
        %v1181 = vmul.f32 %v781, %v1172
        %v1184 = vrot.slane %v1180, 4
        %v1185 = vrot.slane %v1181, 4
        %v1188 = vadd.f32 %v1178, %v1184
        %v1189 = vadd.f32 %v1179, %v1185
        %v1190 = vmul.f32 %v782, %v1174
        %v1191 = vmul.f32 %v783, %v1176
        %v1192 = vadd.f32 %v1188, %v1190
        %v1193 = vadd.f32 %v1189, %v1191
        %v1194 = vmul.f32 %v784, %v1174
        %v1195 = vmul.f32 %v785, %v1176
        %v1198 = vrot.slane %v1194, 4
        %v1199 = vrot.slane %v1195, 4
        %v1202 = vadd.f32 %v1192, %v1198
        %v1203 = vadd.f32 %v1193, %v1199
        %v1206 = vcombine.low %v1202, %v1203
        %1208 = vst [vmem:[%s190] sm:$0xff] %v1206
        %s1209 = sand.u32 %s93, 1
        %s1210 = scalar_lea.sflag [#allocation4], %s1209
        %s1211 = sand.u32 %s93, 1
        %s1212 = smul.addr %s1211, 8
        %s1213 = scalar_lea.vmem [#allocation5], %s1212
        // Predicated region
        $region33: #{tpu_custom_call.1} parent=27 // pred_check
          %p1214 = pneg %p103
        $region34: #{tpu_custom_call.1} parent=27 // pred_check_branch
          %1216 = sbr.rel (%p1214) target = $region36
        $region35: #{tpu_custom_call.1} parent=27 // pred_region
          %s1217 = smul.u32 2, %s24
          %s1219 = ssub.s32 128, 128
          %1220 = vsyncadd %s1210, %s1219
          %s1221 = smul.addr %s23, 2
          %s1222 = sadd.s32 %s1217, %s1221
          %s1223 = smul.addr %s1222, 64
          %s1224 = scalar_lea.hbm %s2, %s1223
          %s1226 = sshll.u32 %s1213, 4
          %s1227 = int_to_ptr.vmem [resolvable:$true] %s1226
          %1229 = dma.vmem_to_hbm [thread:$0]  %s1227, 128, %s1224, %s1210
        $region36: #{tpu_custom_call.1} parent=27 // pred_fallthru
          _
      $region28: #{tpu_custom_call.1} parent=5 // pred_fallthru
        _
      %p1230 = scmp.le.s32.totalorder 2, %s14
      // Predicated region
      $region37: #{tpu_custom_call.1} parent=5 // pred_check
        %p1231 = pneg %p1230
      $region38: #{tpu_custom_call.1} parent=5 // pred_check_branch
        %1233 = sbr.rel (%p1231) target = $region40
      $region39: #{tpu_custom_call.1} parent=5 // pred_region
        %s1234 = ssub.s32 %s14, 2
        // Predicated region
        $region41: #{tpu_custom_call.1} parent=39 // pred_check
          %p1235 = pneg %p109
        $region42: #{tpu_custom_call.1} parent=39 // pred_check_branch
          %1237 = sbr.rel (%p1235) target = $region44
        $region43: #{tpu_custom_call.1} parent=39 // pred_region
          %s1238 = sand.u32 %s94, 1
          %s1239 = scalar_lea.sflag [#allocation4], %s1238
          %s1240 = sand.u32 %s94, 1
          %s1241 = smul.addr %s1240, 8
          %s1242 = scalar_lea.vmem [#allocation5], %s1241
          %1243 = dma.done %s1239, 128
        $region44: #{tpu_custom_call.1} parent=39 // pred_fallthru
          _
      $region40: #{tpu_custom_call.1} parent=5 // pred_fallthru
        _
    $region6: #{tpu_custom_call.1} parent=1 // loop_footer
      %s18 = sadd.s32 1, %s14
    $region7: #{tpu_custom_call.1} parent=1 // loop_footer_branch
      %13 = sbr.rel target = $region3
    $region8: #{tpu_custom_call.1} parent=1 // loop_exit
      _
    %1244 = vsyncpa [#allocation3], 1
    %s1245 = scalar_lea.sflag [#allocation3], 1
    %1246 = vsyncpa %s1245, 1
    %1247 = vsyncpa [#allocation4], 1
    %s1248 = scalar_lea.sflag [#allocation4], 1
    %1249 = vsyncpa %s1248, 1

</llo_original>
